<compile_context>
chip_gen: v7x
topology: tpu7x:2x2x1
jax: 0.10.0
libtpu: 0.0.40
codegen_flags: <defaults>
</compile_context>

<pallas_src>
import functools
import math

import numpy as np
import jax
import jax.numpy as jnp
from jax.experimental import pallas as pl
from jax.experimental.pallas import tpu as pltpu

LAYERS = 1      # matches `layers = 1` in the PyTorch file (kernel body hardcodes one layer)
MAX_LEN = 128   # matches `max_len = 128`
LANES = 128     # TPU vreg lane width
NEG_INF = -1e30


def _round_up(x, m):
    return ((x + m - 1) // m) * m


# --------------------------------------------------------------------------- #
# Kernel: one packed block of SB sentences (R = SB*n rows) per grid step.
# Weights / emb table / mask use constant index_maps -> resident in VMEM.
# --------------------------------------------------------------------------- #
def encoder_kernel(ids_ref, mask_ref, emb_ref, wq_ref, wk_ref, wv_ref,
                   w1t_ref, b1_ref, w2t_ref, b2_ref, wout_ref, bout_ref,
                   out_ref, *, compute_dtype):
    R = ids_ref.shape[0]          # packed rows = SB * n
    Vp = emb_ref.shape[0]         # padded vocab

    # ---- Embedding gather fused as an exact one-hot matmul ----
    ids = ids_ref[...]                                            # (R, 1) int32
    vocab_iota = jax.lax.broadcasted_iota(jnp.int32, (R, Vp), 1)
    onehot = jnp.where(ids == vocab_iota, 1.0, 0.0).astype(compute_dtype)   # (R, Vp)
    H = jnp.dot(onehot, emb_ref[...],
                preferred_element_type=jnp.float32)               # (R, dp) f32
    Hc = H.astype(compute_dtype)

    # ---- MaskedSelfAttentionLayer (LAYERS == 1); 1/sqrt(d) pre-folded into wq ----
    Q = jnp.dot(Hc, wq_ref[...], preferred_element_type=jnp.float32)
    K = jnp.dot(Hc, wk_ref[...], preferred_element_type=jnp.float32)
    V = jnp.dot(Hc, wv_ref[...], preferred_element_type=jnp.float32)

    # Q @ K^T without materializing K^T (NT contraction over last dims).
    scores = jax.lax.dot_general(
        Q.astype(compute_dtype), K.astype(compute_dtype),
        dimension_numbers=(((1,), (1,)), ((), ())),
        preferred_element_type=jnp.float32)                       # (R, R)
    scores = scores + mask_ref[...]        # block-diagonal causal mask (0 / -1e30)

    scores = scores - jnp.max(scores, axis=-1, keepdims=True)
    p = jnp.exp(scores)
    A = p * pl.reciprocal(jnp.sum(p, axis=-1, keepdims=True), approx=True)
    H1 = jnp.dot(A.astype(compute_dtype), V.astype(compute_dtype),
                 preferred_element_type=jnp.float32)              # (R, dp)

    # ---- Feed-forward: Linear -> ReLU -> Linear, residual add with H1 ----
    H2 = jnp.dot(H1.astype(compute_dtype), w1t_ref[...],
                 preferred_element_type=jnp.float32) + b1_ref[...]
    H3 = jnp.maximum(H2, 0.0)
    H4 = jnp.dot(H3.astype(compute_dtype), w2t_ref[...],
                 preferred_element_type=jnp.float32) + b2_ref[...]
    Hres = H4 + H1

    # ---- Output head LinearLayer(d, 1) + sigmoid, as a lane-dense (1, R) row ----
    H5 = jax.lax.dot_general(
        wout_ref[...], Hres,
        dimension_numbers=(((1,), (1,)), ((), ())),
        preferred_element_type=jnp.float32) + bout_ref[0, 0]      # (1, R)
    out_ref[...] = jax.nn.sigmoid(H5)


# --------------------------------------------------------------------------- #
# One-time host-side parameter prep (cache and reuse across forward calls).
# --------------------------------------------------------------------------- #
def _pad2(x, rows, cols, dtype):
    x = jnp.asarray(x, dtype)
    return jnp.pad(x, ((0, rows - x.shape[0]), (0, cols - x.shape[1])))


def prepare_params(params, compute_dtype=jnp.bfloat16):
    """Pad to full 128-lane tiles, pre-transpose FFN weights, fold 1/sqrt(d) into wq,
    cast MXU operands to bf16.  Call once; reuse the result for every forward."""
    vocab, d = params["emb"].shape
    dp = _round_up(max(d, LANES), LANES)
    vp = _round_up(max(vocab, 8), LANES)
    scale = 1.0 / math.sqrt(d)                       # uses the *unpadded* feature dim

    prepared = {
        "emb":  _pad2(params["emb"], vp, dp, compute_dtype),
        "wq":   _pad2(params["wq"] * scale, dp, dp, compute_dtype),   # scale folded in
        "wk":   _pad2(params["wk"], dp, dp, compute_dtype),
        "wv":   _pad2(params["wv"], dp, dp, compute_dtype),
        "w1t":  _pad2(params["w1"].T, dp, dp, compute_dtype),         # y = x @ W.T
        "b1":   _pad2(params["b1"], 1, dp, jnp.float32),
        "w2t":  _pad2(params["w2"].T, dp, dp, compute_dtype),
        "b2":   _pad2(params["b2"], 1, dp, jnp.float32),
        "wout": _pad2(params["wout"], 1, dp, jnp.float32),
        "bout": jnp.asarray(params["bout"], jnp.float32).reshape(1, 1),
    }
    meta = {"dp": dp, "vp": vp, "compute_dtype": compute_dtype}
    return prepared, meta


@functools.lru_cache(maxsize=None)
def _block_causal_mask(n, sb):
    """Additive block-diagonal causal mask for sb packed sentences of length n."""
    R = n * sb
    idx = np.arange(R)
    sent, pos = idx // n, idx % n
    ok = (sent[:, None] == sent[None, :]) & (pos[None, :] <= pos[:, None])
    return jnp.asarray(np.where(ok, 0.0, NEG_INF).astype(np.float32))


@functools.lru_cache(maxsize=None)
def _packing(batch, n):
    """Sentences packed per block (sb) and number of grid blocks."""
    sb = max(1, LANES // n) if n <= LANES else 1
    sb = min(sb, batch)
    num_blocks = -(-batch // sb)
    # v7x has 2 TensorCores sharing the parallel grid axis: keep >= 2 blocks when
    # there is enough work (costs ~0.35us of extra per-step overhead on v5e/v6e).
    if num_blocks < 2 and batch > 1:
        sb = -(-batch // 2)
        num_blocks = -(-batch // sb)
    return sb, num_blocks


def classifier_encoder_forward(words, prepared, meta):
    """words: (B, n) int32 (or (n,) for one sentence).  Returns (B, n, 1) sigmoid outputs
    (caller cares about the CLS position)."""
    squeeze = words.ndim == 1
    if squeeze:
        words = words[None]
    words = jnp.asarray(words, jnp.int32)
    B, n = words.shape
    dp, vp, cd = meta["dp"], meta["vp"], meta["compute_dtype"]

    sb, num_blocks = _packing(B, n)
    R = sb * n
    Bp = sb * num_blocks

    # Pack sentences into (num_blocks, R, 1) word-id blocks (pad batch with id 0).
    ids = jnp.pad(words, ((0, Bp - B), (0, 0))).reshape(num_blocks, R, 1)
    mask = _block_causal_mask(n, sb)                              # (R, R), cached

    const = lambda b: (0, 0)
    grid_spec = pltpu.PrefetchScalarGridSpec(
        num_scalar_prefetch=0,
        grid=(num_blocks,),
        in_specs=[
            pl.BlockSpec((pl.Squeezed(), R, 1), lambda b: (b, 0, 0)),  # packed word ids
            pl.BlockSpec((R, R), const),                               # block-causal mask
            pl.BlockSpec((vp, dp), const),                             # emb table (resident)
            pl.BlockSpec((dp, dp), const),                             # wq (scale folded in)
            pl.BlockSpec((dp, dp), const),                             # wk
            pl.BlockSpec((dp, dp), const),                             # wv
            pl.BlockSpec((dp, dp), const),                             # w1^T
            pl.BlockSpec((1, dp), const),                              # b1
            pl.BlockSpec((dp, dp), const),                             # w2^T
            pl.BlockSpec((1, dp), const),                              # b2
            pl.BlockSpec((1, dp), const),                              # wout row
            pl.BlockSpec(memory_space=pltpu.MemorySpace.SMEM),         # bout scalar
        ],
        out_specs=pl.BlockSpec((pl.Squeezed(), 1, R), lambda b: (b, 0, 0)),
    )

    out = pl.pallas_call(
        functools.partial(encoder_kernel, compute_dtype=cd),
        out_shape=jax.ShapeDtypeStruct((num_blocks, 1, R), jnp.float32),
        grid_spec=grid_spec,
        compiler_params=pltpu.CompilerParams(
            dimension_semantics=("parallel",)),
    )(ids, mask,
      prepared["emb"], prepared["wq"], prepared["wk"], prepared["wv"],
      prepared["w1t"], prepared["b1"], prepared["w2t"], prepared["b2"],
      prepared["wout"], prepared["bout"])

    res = out.reshape(Bp, n)[:B, :, None]                         # (B, n, 1)
    return res[0] if squeeze else res


def init_params(key, vocab_size, dims):
    ks = jax.random.split(key, 12)
    s = 0.1
    norm = lambda k, shape: (jax.random.normal(k, shape, jnp.float32) * s)
    return {
        "emb":  norm(ks[0], (vocab_size, dims)),
        "pos":  norm(ks[1], (MAX_LEN, dims)),   # present in __init__, unused in forward()
        "wq":   norm(ks[2], (dims, dims)),
        "wk":   norm(ks[3], (dims, dims)),
        "wv":   norm(ks[4], (dims, dims)),
        "w1":   norm(ks[5], (dims, dims)),      # LinearLayer(dims, dims): W is (out, in)
        "b1":   norm(ks[6], (1, dims)),
        "w2":   norm(ks[7], (dims, dims)),
        "b2":   norm(ks[8], (1, dims)),
        "wout": norm(ks[9], (1, dims)),         # LinearLayer(dims, 1)
        "bout": norm(ks[10], (1, 1)),
    }


def reference_forward(words, params):
    """Plain-JAX f32 reference of the same forward pass, vmapped over the batch."""
    d = params["emb"].shape[1]

    def one(sent):
        H = params["emb"][sent]
        n = H.shape[0]
        Q = H @ params["wq"]
        K = H @ params["wk"]
        V = H @ params["wv"]
        s = (Q @ K.T) / math.sqrt(d)
        causal = jnp.tril(jnp.ones((n, n), dtype=bool))
        s = jnp.where(causal, s, NEG_INF)
        A = jax.nn.softmax(s, axis=-1)
        H1 = A @ V
        H2 = H1 @ params["w1"].T + params["b1"]
        H3 = jnp.maximum(H2, 0.0)
        H4 = H3 @ params["w2"].T + params["b2"]
        Hr = H4 + H1
        return jax.nn.sigmoid(Hr @ params["wout"].T + params["bout"])

    return jax.vmap(one)(jnp.atleast_2d(words))


if __name__ == "__main__":
    key = jax.random.PRNGKey(0)
    vocab_size, dims, seq, batch = 50, 32, 8, 2

    pkey, wkey = jax.random.split(key)
    params = init_params(pkey, vocab_size, dims)
    prepared, meta = prepare_params(params)      # one-time prep, reused across calls
    # TODO(synk): for very large vocabularies (emb table not comfortably VMEM-resident),
    # fall back to an XLA gather feeding the kernel instead of the fused one-hot matmul.

    # Batch of sentences, each with a CLS token (id 1) prepended; total length = seq.
    words = jnp.concatenate([
        jnp.ones((batch, 1), dtype=jnp.int32),
        jax.random.randint(wkey, (batch, seq - 1), 2, vocab_size, dtype=jnp.int32),
    ], axis=1)

    res = classifier_encoder_forward(words, prepared, meta)
    jax.block_until_ready(res)
    assert res.shape == (batch, seq, 1)

    ref = reference_forward(words, params)
    err = float(jnp.max(jnp.abs(res - ref)))
    assert err < 1e-2, f"kernel output mismatch vs reference: {err}"
    print("KERNEL_OK")
</pallas_src>

<mosaic_0001>
module attributes {stable_mosaic.version = 11 : i64} {
  func.func @encoder_kernel(%arg0: i32, %arg1: memref<1x8x1xi32, #tpu.memory_space<vmem>>, %arg2: memref<8x8xf32, #tpu.memory_space<vmem>>, %arg3: memref<128x128xbf16, #tpu.memory_space<vmem>>, %arg4: memref<128x128xbf16, #tpu.memory_space<vmem>>, %arg5: memref<128x128xbf16, #tpu.memory_space<vmem>>, %arg6: memref<128x128xbf16, #tpu.memory_space<vmem>>, %arg7: memref<128x128xbf16, #tpu.memory_space<vmem>>, %arg8: memref<1x128xf32, #tpu.memory_space<vmem>>, %arg9: memref<128x128xbf16, #tpu.memory_space<vmem>>, %arg10: memref<1x128xf32, #tpu.memory_space<vmem>>, %arg11: memref<1x128xf32, #tpu.memory_space<vmem>>, %arg12: memref<1x1xf32, #tpu.memory_space<smem>>, %arg13: memref<1x1x8xf32, #tpu.memory_space<vmem>>) attributes {dimension_semantics = [#tpu.dimension_semantics<parallel>], iteration_bounds = array<i64: 2>, scalar_prefetch = 0 : i64, scratch_operands = 0 : i64, tpu.core_type = #tpu.core_type<tc>, window_params = [{transform_indices = @transform_0, window_bounds = array<i64: 1, 8, 1>}, {pipeline_mode = #tpu.pipeline_mode<synchronous>, transform_indices = @transform_1, window_bounds = array<i64: 8, 8>}, {pipeline_mode = #tpu.pipeline_mode<synchronous>, transform_indices = @transform_2, window_bounds = array<i64: 128, 128>}, {pipeline_mode = #tpu.pipeline_mode<synchronous>, transform_indices = @transform_3, window_bounds = array<i64: 128, 128>}, {pipeline_mode = #tpu.pipeline_mode<synchronous>, transform_indices = @transform_4, window_bounds = array<i64: 128, 128>}, {pipeline_mode = #tpu.pipeline_mode<synchronous>, transform_indices = @transform_5, window_bounds = array<i64: 128, 128>}, {pipeline_mode = #tpu.pipeline_mode<synchronous>, transform_indices = @transform_6, window_bounds = array<i64: 128, 128>}, {pipeline_mode = #tpu.pipeline_mode<synchronous>, transform_indices = @transform_7, window_bounds = array<i64: 1, 128>}, {pipeline_mode = #tpu.pipeline_mode<synchronous>, transform_indices = @transform_8, window_bounds = array<i64: 128, 128>}, {pipeline_mode = #tpu.pipeline_mode<synchronous>, transform_indices = @transform_9, window_bounds = array<i64: 1, 128>}, {pipeline_mode = #tpu.pipeline_mode<synchronous>, transform_indices = @transform_10, window_bounds = array<i64: 1, 128>}, {transform_indices = @transform_11, window_bounds = array<i64: 1, 1>}, {transform_indices = @transform_12, window_bounds = array<i64: 1, 1, 8>}]} {
    %c0 = arith.constant 0 : index
    %c0_0 = arith.constant 0 : index
    %c0_1 = arith.constant 0 : index
    %0 = vector.load %arg1[%c0, %c0_0, %c0_1] : memref<1x8x1xi32, #tpu.memory_space<vmem>>, vector<1x8x1xi32>
    %1 = vector.shape_cast %0 : vector<1x8x1xi32> to vector<8x1xi32>
    %2 = tpu.iota {dimensions = array<i32: 1>} : vector<8x128xi32>
    %3 = vector.broadcast %1 : vector<8x1xi32> to vector<8x128xi32>
    %4 = arith.cmpi eq, %3, %2 : vector<8x128xi32>
    %cst = arith.constant 1.000000e+00 : f32
    %cst_2 = arith.constant 0.000000e+00 : f32
    %5 = vector.broadcast %cst : f32 to vector<8x128xf32>
    %6 = vector.broadcast %cst_2 : f32 to vector<8x128xf32>
    %7 = arith.select %4, %5, %6 : vector<8x128xi1>, vector<8x128xf32>
    %8 = arith.truncf %7 : vector<8x128xf32> to vector<8x128xbf16>
    %c0_3 = arith.constant 0 : index
    %c0_4 = arith.constant 0 : index
    %9 = vector.load %arg3[%c0_3, %c0_4] : memref<128x128xbf16, #tpu.memory_space<vmem>>, vector<128x128xbf16>
    %cst_5 = arith.constant dense<0.000000e+00> : vector<8x128xf32>
    %10 = tpu.matmul %8, %9, %cst_5 {dimension_numbers = #tpu.dot_dimension_numbers<[1], [0], [0], [1], [0, 0, 1, 1], [], []>} : vector<8x128xbf16>, vector<128x128xbf16>, vector<8x128xf32> -> vector<8x128xf32>
    %11 = arith.truncf %10 : vector<8x128xf32> to vector<8x128xbf16>
    %c0_6 = arith.constant 0 : index
    %c0_7 = arith.constant 0 : index
    %12 = vector.load %arg4[%c0_6, %c0_7] : memref<128x128xbf16, #tpu.memory_space<vmem>>, vector<128x128xbf16>
    %cst_8 = arith.constant dense<0.000000e+00> : vector<8x128xf32>
    %13 = tpu.matmul %11, %12, %cst_8 {dimension_numbers = #tpu.dot_dimension_numbers<[1], [0], [0], [1], [0, 0, 1, 1], [], []>} : vector<8x128xbf16>, vector<128x128xbf16>, vector<8x128xf32> -> vector<8x128xf32>
    %c0_9 = arith.constant 0 : index
    %c0_10 = arith.constant 0 : index
    %14 = vector.load %arg5[%c0_9, %c0_10] : memref<128x128xbf16, #tpu.memory_space<vmem>>, vector<128x128xbf16>
    %cst_11 = arith.constant dense<0.000000e+00> : vector<8x128xf32>
    %15 = tpu.matmul %11, %14, %cst_11 {dimension_numbers = #tpu.dot_dimension_numbers<[1], [0], [0], [1], [0, 0, 1, 1], [], []>} : vector<8x128xbf16>, vector<128x128xbf16>, vector<8x128xf32> -> vector<8x128xf32>
    %c0_12 = arith.constant 0 : index
    %c0_13 = arith.constant 0 : index
    %16 = vector.load %arg6[%c0_12, %c0_13] : memref<128x128xbf16, #tpu.memory_space<vmem>>, vector<128x128xbf16>
    %cst_14 = arith.constant dense<0.000000e+00> : vector<8x128xf32>
    %17 = tpu.matmul %11, %16, %cst_14 {dimension_numbers = #tpu.dot_dimension_numbers<[1], [0], [0], [1], [0, 0, 1, 1], [], []>} : vector<8x128xbf16>, vector<128x128xbf16>, vector<8x128xf32> -> vector<8x128xf32>
    %18 = arith.truncf %13 : vector<8x128xf32> to vector<8x128xbf16>
    %19 = arith.truncf %15 : vector<8x128xf32> to vector<8x128xbf16>
    %cst_15 = arith.constant dense<0.000000e+00> : vector<8x8xf32>
    %20 = tpu.matmul %18, %19, %cst_15 {dimension_numbers = #tpu.dot_dimension_numbers<[1], [1], [0], [0], [0, 0, 1, 0], [], []>} : vector<8x128xbf16>, vector<8x128xbf16>, vector<8x8xf32> -> vector<8x8xf32>
    %c0_16 = arith.constant 0 : index
    %c0_17 = arith.constant 0 : index
    %21 = vector.load %arg2[%c0_16, %c0_17] : memref<8x8xf32, #tpu.memory_space<vmem>>, vector<8x8xf32>
    %22 = arith.addf %20, %21 : vector<8x8xf32>
    %cst_18 = arith.constant dense<0xFF800000> : vector<8xf32>
    %23 = vector.multi_reduction <maximumf>, %22, %cst_18 [1] : vector<8x8xf32> to vector<8xf32>
    %24 = vector.shape_cast %23 : vector<8xf32> to vector<8x1xf32>
    %25 = vector.broadcast %24 : vector<8x1xf32> to vector<8x8xf32>
    %26 = arith.subf %22, %25 : vector<8x8xf32>
    %27 = math.exp %26 : vector<8x8xf32>
    %cst_19 = arith.constant dense<0.000000e+00> : vector<8xf32>
    %28 = vector.multi_reduction <add>, %27, %cst_19 [1] : vector<8x8xf32> to vector<8xf32>
    %29 = vector.shape_cast %28 : vector<8xf32> to vector<8x1xf32>
    %30 = tpu.reciprocal %29 {approx = true} : vector<8x1xf32> -> vector<8x1xf32>
    %31 = vector.broadcast %30 : vector<8x1xf32> to vector<8x8xf32>
    %32 = arith.mulf %27, %31 : vector<8x8xf32>
    %33 = arith.truncf %32 : vector<8x8xf32> to vector<8x8xbf16>
    %34 = arith.truncf %17 : vector<8x128xf32> to vector<8x128xbf16>
    %cst_20 = arith.constant dense<0.000000e+00> : vector<8x128xf32>
    %35 = tpu.matmul %33, %34, %cst_20 {dimension_numbers = #tpu.dot_dimension_numbers<[1], [0], [0], [1], [0, 0, 1, 1], [], []>} : vector<8x8xbf16>, vector<8x128xbf16>, vector<8x128xf32> -> vector<8x128xf32>
    %36 = arith.truncf %35 : vector<8x128xf32> to vector<8x128xbf16>
    %c0_21 = arith.constant 0 : index
    %c0_22 = arith.constant 0 : index
    %37 = vector.load %arg7[%c0_21, %c0_22] : memref<128x128xbf16, #tpu.memory_space<vmem>>, vector<128x128xbf16>
    %cst_23 = arith.constant dense<0.000000e+00> : vector<8x128xf32>
    %38 = tpu.matmul %36, %37, %cst_23 {dimension_numbers = #tpu.dot_dimension_numbers<[1], [0], [0], [1], [0, 0, 1, 1], [], []>} : vector<8x128xbf16>, vector<128x128xbf16>, vector<8x128xf32> -> vector<8x128xf32>
    %c0_24 = arith.constant 0 : index
    %c0_25 = arith.constant 0 : index
    %39 = vector.load %arg8[%c0_24, %c0_25] : memref<1x128xf32, #tpu.memory_space<vmem>>, vector<1x128xf32>
    %40 = vector.broadcast %39 : vector<1x128xf32> to vector<8x128xf32>
    %41 = arith.addf %38, %40 : vector<8x128xf32>
    %cst_26 = arith.constant 0.000000e+00 : f32
    %42 = vector.broadcast %cst_26 : f32 to vector<8x128xf32>
    %43 = arith.maximumf %41, %42 : vector<8x128xf32>
    %44 = arith.truncf %43 : vector<8x128xf32> to vector<8x128xbf16>
    %c0_27 = arith.constant 0 : index
    %c0_28 = arith.constant 0 : index
    %45 = vector.load %arg9[%c0_27, %c0_28] : memref<128x128xbf16, #tpu.memory_space<vmem>>, vector<128x128xbf16>
    %cst_29 = arith.constant dense<0.000000e+00> : vector<8x128xf32>
    %46 = tpu.matmul %44, %45, %cst_29 {dimension_numbers = #tpu.dot_dimension_numbers<[1], [0], [0], [1], [0, 0, 1, 1], [], []>} : vector<8x128xbf16>, vector<128x128xbf16>, vector<8x128xf32> -> vector<8x128xf32>
    %c0_30 = arith.constant 0 : index
    %c0_31 = arith.constant 0 : index
    %47 = vector.load %arg10[%c0_30, %c0_31] : memref<1x128xf32, #tpu.memory_space<vmem>>, vector<1x128xf32>
    %48 = vector.broadcast %47 : vector<1x128xf32> to vector<8x128xf32>
    %49 = arith.addf %46, %48 : vector<8x128xf32>
    %50 = arith.addf %49, %35 : vector<8x128xf32>
    %c0_32 = arith.constant 0 : index
    %c0_33 = arith.constant 0 : index
    %51 = vector.load %arg11[%c0_32, %c0_33] : memref<1x128xf32, #tpu.memory_space<vmem>>, vector<1x128xf32>
    %cst_34 = arith.constant dense<0.000000e+00> : vector<1x8xf32>
    %52 = tpu.matmul %51, %50, %cst_34 {dimension_numbers = #tpu.dot_dimension_numbers<[1], [1], [0], [0], [0, 0, 1, 0], [], []>} : vector<1x128xf32>, vector<8x128xf32>, vector<1x8xf32> -> vector<1x8xf32>
    %c0_35 = arith.constant 0 : index
    %c0_36 = arith.constant 0 : index
    %53 = memref.load %arg12[%c0_35, %c0_36] : memref<1x1xf32, #tpu.memory_space<smem>>
    %54 = vector.broadcast %53 : f32 to vector<1x8xf32>
    %55 = arith.addf %52, %54 : vector<1x8xf32>
    %56 = arith.negf %55 : vector<1x8xf32>
    %57 = math.exp %56 : vector<1x8xf32>
    %cst_37 = arith.constant 1.000000e+00 : f32
    %58 = vector.broadcast %cst_37 : f32 to vector<1x8xf32>
    %59 = arith.addf %58, %57 : vector<1x8xf32>
    %60 = arith.divf %58, %59 : vector<1x8xf32>
    %c0_38 = arith.constant 0 : index
    %c0_39 = arith.constant 0 : index
    %c0_40 = arith.constant 0 : index
    %61 = vector.load %arg13[%c0_38, %c0_39, %c0_40] : memref<1x1x8xf32, #tpu.memory_space<vmem>>, vector<1x1x8xf32>
    %62 = vector.shape_cast %61 : vector<1x1x8xf32> to vector<1x8xf32>
    %63 = vector.shape_cast %60 : vector<1x8xf32> to vector<1x1x8xf32>
    tpu.vector_store %arg13[%c0_38, %c0_39, %c0_40], %63 {strides = array<i32>} : memref<1x1x8xf32, #tpu.memory_space<vmem>>, vector<1x1x8xf32>,
    return
  }
  func.func @transform_0(%arg0: i32) -> (i32, i32, i32) {
    %c0_i32 = arith.constant 0 : i32
    %c0_i32_0 = arith.constant 0 : i32
    %c0_i32_1 = arith.constant 0 : i32
    return %arg0, %c0_i32, %c0_i32_0 : i32, i32, i32
  }
  func.func @transform_1(%arg0: i32) -> (i32, i32) {
    %c0_i32 = arith.constant 0 : i32
    %c0_i32_0 = arith.constant 0 : i32
    %c0_i32_1 = arith.constant 0 : i32
    return %c0_i32, %c0_i32_0 : i32, i32
  }
  func.func @transform_2(%arg0: i32) -> (i32, i32) {
    %c0_i32 = arith.constant 0 : i32
    %c0_i32_0 = arith.constant 0 : i32
    %c0_i32_1 = arith.constant 0 : i32
    return %c0_i32, %c0_i32_0 : i32, i32
  }
  func.func @transform_3(%arg0: i32) -> (i32, i32) {
    %c0_i32 = arith.constant 0 : i32
    %c0_i32_0 = arith.constant 0 : i32
    %c0_i32_1 = arith.constant 0 : i32
    return %c0_i32, %c0_i32_0 : i32, i32
  }
  func.func @transform_4(%arg0: i32) -> (i32, i32) {
    %c0_i32 = arith.constant 0 : i32
    %c0_i32_0 = arith.constant 0 : i32
    %c0_i32_1 = arith.constant 0 : i32
    return %c0_i32, %c0_i32_0 : i32, i32
  }
  func.func @transform_5(%arg0: i32) -> (i32, i32) {
    %c0_i32 = arith.constant 0 : i32
    %c0_i32_0 = arith.constant 0 : i32
    %c0_i32_1 = arith.constant 0 : i32
    return %c0_i32, %c0_i32_0 : i32, i32
  }
  func.func @transform_6(%arg0: i32) -> (i32, i32) {
    %c0_i32 = arith.constant 0 : i32
    %c0_i32_0 = arith.constant 0 : i32
    %c0_i32_1 = arith.constant 0 : i32
    return %c0_i32, %c0_i32_0 : i32, i32
  }
  func.func @transform_7(%arg0: i32) -> (i32, i32) {
    %c0_i32 = arith.constant 0 : i32
    %c0_i32_0 = arith.constant 0 : i32
    %c0_i32_1 = arith.constant 0 : i32
    return %c0_i32, %c0_i32_0 : i32, i32
  }
  func.func @transform_8(%arg0: i32) -> (i32, i32) {
    %c0_i32 = arith.constant 0 : i32
    %c0_i32_0 = arith.constant 0 : i32
    %c0_i32_1 = arith.constant 0 : i32
    return %c0_i32, %c0_i32_0 : i32, i32
  }
  func.func @transform_9(%arg0: i32) -> (i32, i32) {
    %c0_i32 = arith.constant 0 : i32
    %c0_i32_0 = arith.constant 0 : i32
    %c0_i32_1 = arith.constant 0 : i32
    return %c0_i32, %c0_i32_0 : i32, i32
  }
  func.func @transform_10(%arg0: i32) -> (i32, i32) {
    %c0_i32 = arith.constant 0 : i32
    %c0_i32_0 = arith.constant 0 : i32
    %c0_i32_1 = arith.constant 0 : i32
    return %c0_i32, %c0_i32_0 : i32, i32
  }
  func.func @transform_11(%arg0: i32) -> (i32, i32) {
    %c0_i32 = arith.constant 0 : i32
    %c0_i32_0 = arith.constant 0 : i32
    %c0_i32_1 = arith.constant 0 : i32
    return %c0_i32, %c0_i32_0 : i32, i32
  }
  func.func @transform_12(%arg0: i32) -> (i32, i32, i32) {
    %c0_i32 = arith.constant 0 : i32
    %c0_i32_0 = arith.constant 0 : i32
    %c0_i32_1 = arith.constant 0 : i32
    return %arg0, %c0_i32, %c0_i32_0 : i32, i32, i32
  }
}

</mosaic_0001>

<llo_original>
// kernel: tpu_custom_call.1
$region0: #{tpu_custom_call.1}
  #allocation0 [shape = 'u32[]', space=smem, size = 0x4, offset = 0x4, fixed_abs, tag = 'smem constant byte address 0x4 - core index']
  #allocation1 [shape = 'u32[144,128]{1,0:T(1,128)}', space=vmem, size = 0x12000, scoped, tag = 'internal scratch']
  #allocation2 [shape = 'f32[1,1]{1,0:T(1,128)S(6)}', space=smem, size = 0x200, scoped, tag = 'scoped memory for tpu_custom_call.1']
  %s0 = inlined_call_operand.vmem [shape: s32[2,8,1], index: 0, kind: input, shape index: {}]
  %s1 = inlined_call_operand.vmem [shape: f32[8,8], index: 1, kind: input, shape index: {}]
  %s2 = inlined_call_operand.hbm [shape: bf16[128,128], index: 2, kind: input, shape index: {}]
  %s3 = inlined_call_operand.hbm [shape: bf16[128,128], index: 3, kind: input, shape index: {}]
  %s4 = inlined_call_operand.hbm [shape: bf16[128,128], index: 4, kind: input, shape index: {}]
  %s5 = inlined_call_operand.hbm [shape: bf16[128,128], index: 5, kind: input, shape index: {}]
  %s6 = inlined_call_operand.hbm [shape: bf16[128,128], index: 6, kind: input, shape index: {}]
  %s7 = inlined_call_operand.vmem [shape: f32[1,128], index: 7, kind: input, shape index: {}]
  %s8 = inlined_call_operand.hbm [shape: bf16[128,128], index: 8, kind: input, shape index: {}]
  %s9 = inlined_call_operand.vmem [shape: f32[1,128], index: 9, kind: input, shape index: {}]
  %s10 = inlined_call_operand.vmem [shape: f32[1,128], index: 10, kind: input, shape index: {}]
  %s11 = inlined_call_operand.<no memory space> [shape: f32[1,1], index: 11, kind: input, shape index: {}]
  %s12 = inlined_call_operand.hbm [shape: f32[2,1,8], index: 12, kind: output, shape index: {}]
  %s13 = sld [smem:[#allocation0]]
  $region105: #{tpu_custom_call.1} parent=0
    _
  %s15 = ssub.s32 1, %s13
  %s16 = scalar_select 0, %s15, %s13
  %17 = sst [smem:[#allocation2]] %s11
  $region1: #{tpu_custom_call.1} parent=0
    #allocation3 [shape = 'u8[32768]{0}', space=vmem, size = 0x8000, scoped, tag = 'input window, operand 2, single buffered']
    #allocation4 [shape = 's32[2]{0}', space=sflag, size = 0x8, scoped, tag = 'scoped memory for tpu_custom_call.1']
    #allocation5 [shape = 's32[2]{0}', space=sflag, size = 0x8, scoped, tag = 'scoped memory for tpu_custom_call.1']
    #allocation6 [shape = 'u8[32768]{0}', space=vmem, size = 0x8000, scoped, tag = 'input window, operand 3, single buffered']
    #allocation7 [shape = 's32[1]{0}', space=sflag, size = 0x4, scoped, tag = 'scoped memory for tpu_custom_call.1']
    #allocation8 [shape = 'u8[32768]{0}', space=vmem, size = 0x8000, scoped, tag = 'input window, operand 4, single buffered']
    #allocation9 [shape = 'u8[32768]{0}', space=vmem, size = 0x8000, scoped, tag = 'input window, operand 5, single buffered']
    #allocation10 [shape = 's32[1]{0}', space=sflag, size = 0x4, scoped, tag = 'scoped memory for tpu_custom_call.1']
    #allocation11 [shape = 'u8[32768]{0}', space=vmem, size = 0x8000, scoped, tag = 'input window, operand 6, single buffered']
    #allocation12 [shape = 'u8[32768]{0}', space=vmem, size = 0x8000, scoped, tag = 'input window, operand 8, single buffered']
    #allocation13 [shape = 's32[1]{0}', space=sflag, size = 0x4, scoped, tag = 'scoped memory for tpu_custom_call.1']
    #allocation14 [shape = 'u8[1024]{0}', space=vmem, size = 0x400, scoped, tag = 'output window, operand 0']
    %18 = vsyncpa [#allocation4], 0
    %19 = vsyncpa [#allocation7], 0
    %20 = vsyncpa [#allocation10], 0
    %21 = vsyncpa [#allocation13], 0
    %22 = vsyncpa [#allocation5], 0
    %s23 = scalar_lea.sflag [#allocation5], 1
    %24 = vsyncpa %s23, 0
    loop: start=0, step=1, limit=4
    $region2: #{tpu_custom_call.1} parent=1 // loop_pre_header
      _
    $region3: #{tpu_custom_call.1} parent=1 // loop_header
      %s26 = sphi 0, %s30
      %p27 = scmp.ge.s32.totalorder %s26, 4
      %s36 = sphi 0, %s38
      %s39 = sphi 0, %s36
      %s40 = sphi 0, %s39
      %s56 = sphi 0, %s40
      %s60 = sphi 0, %s60
      %s62 = sphi 0, %s60
      %s63 = sphi 0, %s62
      %s77 = sphi 0, %s63
      %s81 = sphi 0, %s81
      %s83 = sphi 0, %s81
      %s84 = sphi 0, %s83
      %s98 = sphi 0, %s84
      %s102 = sphi 0, %s102
      %s104 = sphi 0, %s102
      %s105 = sphi 0, %s104
      %s119 = sphi 0, %s105
      %s123 = sphi 0, %s123
      %s125 = sphi 0, %s123
      %s126 = sphi 0, %s125
      %s140 = sphi 0, %s126
      %s144 = sphi 0, %s144
      %s146 = sphi 0, %s144
      %s147 = sphi 0, %s146
      %s161 = sphi 0, %s147
      %s165 = sphi 0, %s165
      %s167 = sphi 0, %s165
      %s168 = sphi 0, %s167
      %s182 = sphi 0, %s168
      %s186 = sphi 0, %s186
      %s188 = sphi 0, %s186
      %s189 = sphi 0, %s188
      %s203 = sphi 0, %s189
      %s207 = sphi 0, %s207
      %s209 = sphi 0, %s207
      %s210 = sphi 0, %s209
      %s224 = sphi 0, %s210
      %s228 = sphi 0, %s228
      %s230 = sphi 0, %s228
      %s231 = sphi 0, %s230
      %s245 = sphi 0, %s231
      %s249 = sphi 0, %s249
      %s251 = sphi 0, %s249
      %s252 = sphi 0, %s251
      %s266 = sphi 0, %s252
      %s270 = sphi 0, %s270
      %s272 = sphi 0, %s270
      %s273 = sphi 0, %s272
      %s287 = sphi 0, %s273
      %s293 = sphi 0, %s295
      %s296 = sphi 0, %s293
      %s297 = sphi 0, %s296
      %s313 = sphi 0, %s297
    $region4: #{tpu_custom_call.1} parent=1 // loop_header_branch
      %29 = sbr.rel (%p27) target = $region8
    $region5: #{tpu_custom_call.1} parent=1 // loop_body
      %s31 = ssub.s32 %s26, 1
      %s32 = ssub.s32 %s26, 2
      %s33 = sadd.s32 %s26, 1
      %s34 = ssub.s32 %s26, %s33
      %p35 = scmp.eq.s32.totalorder %s34, 0
      %s37 = sadd.s32 %s36, 1
      %s38 = scalar_select %p35, %s36, %s37
      %p41 = pneg %p35
      %p42 = scmp.eq.s32.totalorder %s26, 1
      %p43 = por %p41, %p42
      %p44 = scmp.ne.s32.totalorder %s36, %s39
      %p45 = scmp.eq.s32.totalorder %s26, 0
      %p46 = por %p44, %p45
      %p47 = scmp.ne.s32.totalorder %s36, %s39
      %p48 = scmp.eq.s32.totalorder %s31, 1
      %p49 = por %p47, %p48
      %p50 = scmp.ne.s32.totalorder %s39, %s40
      %p51 = scmp.eq.s32.totalorder %s31, 0
      %p52 = por %p50, %p51
      %p53 = scmp.ne.s32.totalorder %s39, %s40
      %p54 = scmp.eq.s32.totalorder %s32, 1
      %p55 = por %p53, %p54
      %p57 = scmp.ne.s32.totalorder %s40, %s56
      %p58 = scmp.eq.s32.totalorder %s32, 0
      %p59 = por %p57, %p58
      %s61 = sadd.s32 %s60, 1
      %p64 = scmp.eq.s32.totalorder %s26, 1
      %p65 = scmp.ne.s32.totalorder %s60, %s62
      %p66 = scmp.eq.s32.totalorder %s26, 0
      %p67 = por %p65, %p66
      %p68 = scmp.ne.s32.totalorder %s60, %s62
      %p69 = scmp.eq.s32.totalorder %s31, 1
      %p70 = por %p68, %p69
      %p71 = scmp.ne.s32.totalorder %s62, %s63
      %p72 = scmp.eq.s32.totalorder %s31, 0
      %p73 = por %p71, %p72
      %p74 = scmp.ne.s32.totalorder %s62, %s63
      %p75 = scmp.eq.s32.totalorder %s32, 1
      %p76 = por %p74, %p75
      %p78 = scmp.ne.s32.totalorder %s63, %s77
      %p79 = scmp.eq.s32.totalorder %s32, 0
      %p80 = por %p78, %p79
      %s82 = sadd.s32 %s81, 1
      %p85 = scmp.eq.s32.totalorder %s26, 1
      %p86 = scmp.ne.s32.totalorder %s81, %s83
      %p87 = scmp.eq.s32.totalorder %s26, 0
      %p88 = por %p86, %p87
      %p89 = scmp.ne.s32.totalorder %s81, %s83
      %p90 = scmp.eq.s32.totalorder %s31, 1
      %p91 = por %p89, %p90
      %p92 = scmp.ne.s32.totalorder %s83, %s84
      %p93 = scmp.eq.s32.totalorder %s31, 0
      %p94 = por %p92, %p93
      %p95 = scmp.ne.s32.totalorder %s83, %s84
      %p96 = scmp.eq.s32.totalorder %s32, 1
      %p97 = por %p95, %p96
      %p99 = scmp.ne.s32.totalorder %s84, %s98
      %p100 = scmp.eq.s32.totalorder %s32, 0
      %p101 = por %p99, %p100
      %s103 = sadd.s32 %s102, 1
      %p106 = scmp.eq.s32.totalorder %s26, 1
      %p107 = scmp.ne.s32.totalorder %s102, %s104
      %p108 = scmp.eq.s32.totalorder %s26, 0
      %p109 = por %p107, %p108
      %p110 = scmp.ne.s32.totalorder %s102, %s104
      %p111 = scmp.eq.s32.totalorder %s31, 1
      %p112 = por %p110, %p111
      %p113 = scmp.ne.s32.totalorder %s104, %s105
      %p114 = scmp.eq.s32.totalorder %s31, 0
      %p115 = por %p113, %p114
      %p116 = scmp.ne.s32.totalorder %s104, %s105
      %p117 = scmp.eq.s32.totalorder %s32, 1
      %p118 = por %p116, %p117
      %p120 = scmp.ne.s32.totalorder %s105, %s119
      %p121 = scmp.eq.s32.totalorder %s32, 0
      %p122 = por %p120, %p121
      %s124 = sadd.s32 %s123, 1
      %p127 = scmp.eq.s32.totalorder %s26, 1
      %p128 = scmp.ne.s32.totalorder %s123, %s125
      %p129 = scmp.eq.s32.totalorder %s26, 0
      %p130 = por %p128, %p129
      %p131 = scmp.ne.s32.totalorder %s123, %s125
      %p132 = scmp.eq.s32.totalorder %s31, 1
      %p133 = por %p131, %p132
      %p134 = scmp.ne.s32.totalorder %s125, %s126
      %p135 = scmp.eq.s32.totalorder %s31, 0
      %p136 = por %p134, %p135
      %p137 = scmp.ne.s32.totalorder %s125, %s126
      %p138 = scmp.eq.s32.totalorder %s32, 1
      %p139 = por %p137, %p138
      %p141 = scmp.ne.s32.totalorder %s126, %s140
      %p142 = scmp.eq.s32.totalorder %s32, 0
      %p143 = por %p141, %p142
      %s145 = sadd.s32 %s144, 1
      %p148 = scmp.eq.s32.totalorder %s26, 1
      %p149 = scmp.ne.s32.totalorder %s144, %s146
      %p150 = scmp.eq.s32.totalorder %s26, 0
      %p151 = por %p149, %p150
      %p152 = scmp.ne.s32.totalorder %s144, %s146
      %p153 = scmp.eq.s32.totalorder %s31, 1
      %p154 = por %p152, %p153
      %p155 = scmp.ne.s32.totalorder %s146, %s147
      %p156 = scmp.eq.s32.totalorder %s31, 0
      %p157 = por %p155, %p156
      %p158 = scmp.ne.s32.totalorder %s146, %s147
      %p159 = scmp.eq.s32.totalorder %s32, 1
      %p160 = por %p158, %p159
      %p162 = scmp.ne.s32.totalorder %s147, %s161
      %p163 = scmp.eq.s32.totalorder %s32, 0
      %p164 = por %p162, %p163
      %s166 = sadd.s32 %s165, 1
      %p169 = scmp.eq.s32.totalorder %s26, 1
      %p170 = scmp.ne.s32.totalorder %s165, %s167
      %p171 = scmp.eq.s32.totalorder %s26, 0
      %p172 = por %p170, %p171
      %p173 = scmp.ne.s32.totalorder %s165, %s167
      %p174 = scmp.eq.s32.totalorder %s31, 1
      %p175 = por %p173, %p174
      %p176 = scmp.ne.s32.totalorder %s167, %s168
      %p177 = scmp.eq.s32.totalorder %s31, 0
      %p178 = por %p176, %p177
      %p179 = scmp.ne.s32.totalorder %s167, %s168
      %p180 = scmp.eq.s32.totalorder %s32, 1
      %p181 = por %p179, %p180
      %p183 = scmp.ne.s32.totalorder %s168, %s182
      %p184 = scmp.eq.s32.totalorder %s32, 0
      %p185 = por %p183, %p184
      %s187 = sadd.s32 %s186, 1
      %p190 = scmp.eq.s32.totalorder %s26, 1
      %p191 = scmp.ne.s32.totalorder %s186, %s188
      %p192 = scmp.eq.s32.totalorder %s26, 0
      %p193 = por %p191, %p192
      %p194 = scmp.ne.s32.totalorder %s186, %s188
      %p195 = scmp.eq.s32.totalorder %s31, 1
      %p196 = por %p194, %p195
      %p197 = scmp.ne.s32.totalorder %s188, %s189
      %p198 = scmp.eq.s32.totalorder %s31, 0
      %p199 = por %p197, %p198
      %p200 = scmp.ne.s32.totalorder %s188, %s189
      %p201 = scmp.eq.s32.totalorder %s32, 1
      %p202 = por %p200, %p201
      %p204 = scmp.ne.s32.totalorder %s189, %s203
      %p205 = scmp.eq.s32.totalorder %s32, 0
      %p206 = por %p204, %p205
      %s208 = sadd.s32 %s207, 1
      %p211 = scmp.eq.s32.totalorder %s26, 1
      %p212 = scmp.ne.s32.totalorder %s207, %s209
      %p213 = scmp.eq.s32.totalorder %s26, 0
      %p214 = por %p212, %p213
      %p215 = scmp.ne.s32.totalorder %s207, %s209
      %p216 = scmp.eq.s32.totalorder %s31, 1
      %p217 = por %p215, %p216
      %p218 = scmp.ne.s32.totalorder %s209, %s210
      %p219 = scmp.eq.s32.totalorder %s31, 0
      %p220 = por %p218, %p219
      %p221 = scmp.ne.s32.totalorder %s209, %s210
      %p222 = scmp.eq.s32.totalorder %s32, 1
      %p223 = por %p221, %p222
      %p225 = scmp.ne.s32.totalorder %s210, %s224
      %p226 = scmp.eq.s32.totalorder %s32, 0
      %p227 = por %p225, %p226
      %s229 = sadd.s32 %s228, 1
      %p232 = scmp.eq.s32.totalorder %s26, 1
      %p233 = scmp.ne.s32.totalorder %s228, %s230
      %p234 = scmp.eq.s32.totalorder %s26, 0
      %p235 = por %p233, %p234
      %p236 = scmp.ne.s32.totalorder %s228, %s230
      %p237 = scmp.eq.s32.totalorder %s31, 1
      %p238 = por %p236, %p237
      %p239 = scmp.ne.s32.totalorder %s230, %s231
      %p240 = scmp.eq.s32.totalorder %s31, 0
      %p241 = por %p239, %p240
      %p242 = scmp.ne.s32.totalorder %s230, %s231
      %p243 = scmp.eq.s32.totalorder %s32, 1
      %p244 = por %p242, %p243
      %p246 = scmp.ne.s32.totalorder %s231, %s245
      %p247 = scmp.eq.s32.totalorder %s32, 0
      %p248 = por %p246, %p247
      %s250 = sadd.s32 %s249, 1
      %p253 = scmp.eq.s32.totalorder %s26, 1
      %p254 = scmp.ne.s32.totalorder %s249, %s251
      %p255 = scmp.eq.s32.totalorder %s26, 0
      %p256 = por %p254, %p255
      %p257 = scmp.ne.s32.totalorder %s249, %s251
      %p258 = scmp.eq.s32.totalorder %s31, 1
      %p259 = por %p257, %p258
      %p260 = scmp.ne.s32.totalorder %s251, %s252
      %p261 = scmp.eq.s32.totalorder %s31, 0
      %p262 = por %p260, %p261
      %p263 = scmp.ne.s32.totalorder %s251, %s252
      %p264 = scmp.eq.s32.totalorder %s32, 1
      %p265 = por %p263, %p264
      %p267 = scmp.ne.s32.totalorder %s252, %s266
      %p268 = scmp.eq.s32.totalorder %s32, 0
      %p269 = por %p267, %p268
      %s271 = sadd.s32 %s270, 1
      %p274 = scmp.eq.s32.totalorder %s26, 1
      %p275 = scmp.ne.s32.totalorder %s270, %s272
      %p276 = scmp.eq.s32.totalorder %s26, 0
      %p277 = por %p275, %p276
      %p278 = scmp.ne.s32.totalorder %s270, %s272
      %p279 = scmp.eq.s32.totalorder %s31, 1
      %p280 = por %p278, %p279
      %p281 = scmp.ne.s32.totalorder %s272, %s273
      %p282 = scmp.eq.s32.totalorder %s31, 0
      %p283 = por %p281, %p282
      %p284 = scmp.ne.s32.totalorder %s272, %s273
      %p285 = scmp.eq.s32.totalorder %s32, 1
      %p286 = por %p284, %p285
      %p288 = scmp.ne.s32.totalorder %s273, %s287
      %p289 = scmp.eq.s32.totalorder %s32, 0
      %p290 = por %p288, %p289
      %s291 = ssub.s32 %s26, %s33
      %p292 = scmp.eq.s32.totalorder %s291, 0
      %s294 = sadd.s32 %s293, 1
      %s295 = scalar_select %p292, %s293, %s294
      %p298 = pneg %p292
      %p299 = scmp.eq.s32.totalorder %s26, 1
      %p300 = por %p298, %p299
      %p301 = scmp.ne.s32.totalorder %s293, %s296
      %p302 = scmp.eq.s32.totalorder %s26, 0
      %p303 = por %p301, %p302
      %p304 = scmp.ne.s32.totalorder %s293, %s296
      %p305 = scmp.eq.s32.totalorder %s31, 1
      %p306 = por %p304, %p305
      %p307 = scmp.ne.s32.totalorder %s296, %s297
      %p308 = scmp.eq.s32.totalorder %s31, 0
      %p309 = por %p307, %p308
      %p310 = scmp.ne.s32.totalorder %s296, %s297
      %p311 = scmp.eq.s32.totalorder %s32, 1
      %p312 = por %p310, %p311
      %p314 = scmp.ne.s32.totalorder %s297, %s313
      %p315 = scmp.eq.s32.totalorder %s32, 0
      %p316 = por %p314, %p315
      %p317 = scmp.le.s32.totalorder 1, %s26
      %p318 = scmp.lt.s32.totalorder %s26, 3
      %p319 = pnand %p317, %p318
      %p320 = pneg %p319
      // Predicated region
      $region9: #{tpu_custom_call.1} parent=5 // pred_check
        _
      $region10: #{tpu_custom_call.1} parent=5 // pred_check_branch
        %322 = sbr.rel (%p319) target = $region12
      $region11: #{tpu_custom_call.1} parent=5 // pred_region
        %s323 = ssub.s32 %s26, 1
        // Predicated region
        $region13: #{tpu_custom_call.1} parent=11 // pred_check
          %p324 = pneg %p73
        $region14: #{tpu_custom_call.1} parent=11 // pred_check_branch
          %326 = sbr.rel (%p324) target = $region16
        $region15: #{tpu_custom_call.1} parent=11 // pred_region
          _
        $region16: #{tpu_custom_call.1} parent=11 // pred_fallthru
          _
        // Predicated region
        $region17: #{tpu_custom_call.1} parent=11 // pred_check
          %p327 = pneg %p94
        $region18: #{tpu_custom_call.1} parent=11 // pred_check_branch
          %329 = sbr.rel (%p327) target = $region20
        $region19: #{tpu_custom_call.1} parent=11 // pred_region
          %s331 = ssub.s32 1024, 1024
          %332 = vsyncadd [#allocation4], %s331
          %s333 = sshll.u32 [#allocation3], 4
          %s334 = int_to_ptr.vmem [resolvable:$true] %s333
          %339 = dma.hbm_to_vmem [thread:$0]  %s2, 1024, %s334, [#allocation4], 64, 64, 4
        $region20: #{tpu_custom_call.1} parent=11 // pred_fallthru
          _
        // Predicated region
        $region21: #{tpu_custom_call.1} parent=11 // pred_check
          %p340 = pneg %p115
        $region22: #{tpu_custom_call.1} parent=11 // pred_check_branch
          %342 = sbr.rel (%p340) target = $region24
        $region23: #{tpu_custom_call.1} parent=11 // pred_region
          %s344 = ssub.s32 1024, 1024
          %345 = vsyncadd [#allocation7], %s344
          %s346 = sshll.u32 [#allocation6], 4
          %s347 = int_to_ptr.vmem [resolvable:$true] %s346
          %352 = dma.hbm_to_vmem [thread:$0]  %s3, 1024, %s347, [#allocation7], 64, 64, 4
        $region24: #{tpu_custom_call.1} parent=11 // pred_fallthru
          _
        // Predicated region
        $region25: #{tpu_custom_call.1} parent=11 // pred_check
          %p353 = pneg %p136
        $region26: #{tpu_custom_call.1} parent=11 // pred_check_branch
          %355 = sbr.rel (%p353) target = $region28
        $region27: #{tpu_custom_call.1} parent=11 // pred_region
          %s357 = ssub.s32 1024, 1024
          %358 = vsyncadd [#allocation7], %s357
          %s359 = sshll.u32 [#allocation8], 4
          %s360 = int_to_ptr.vmem [resolvable:$true] %s359
          %365 = dma.hbm_to_vmem [thread:$0]  %s4, 1024, %s360, [#allocation7], 64, 64, 4
        $region28: #{tpu_custom_call.1} parent=11 // pred_fallthru
          _
        // Predicated region
        $region29: #{tpu_custom_call.1} parent=11 // pred_check
          %p366 = pneg %p157
        $region30: #{tpu_custom_call.1} parent=11 // pred_check_branch
          %368 = sbr.rel (%p366) target = $region32
        $region31: #{tpu_custom_call.1} parent=11 // pred_region
          %s370 = ssub.s32 1024, 1024
          %371 = vsyncadd [#allocation10], %s370
          %s372 = sshll.u32 [#allocation9], 4
          %s373 = int_to_ptr.vmem [resolvable:$true] %s372
          %378 = dma.hbm_to_vmem [thread:$0]  %s5, 1024, %s373, [#allocation10], 64, 64, 4
        $region32: #{tpu_custom_call.1} parent=11 // pred_fallthru
          _
        // Predicated region
        $region33: #{tpu_custom_call.1} parent=11 // pred_check
          %p379 = pneg %p178
        $region34: #{tpu_custom_call.1} parent=11 // pred_check_branch
          %381 = sbr.rel (%p379) target = $region36
        $region35: #{tpu_custom_call.1} parent=11 // pred_region
          %s383 = ssub.s32 1024, 1024
          %384 = vsyncadd [#allocation10], %s383
          %s385 = sshll.u32 [#allocation11], 4
          %s386 = int_to_ptr.vmem [resolvable:$true] %s385
          %391 = dma.hbm_to_vmem [thread:$0]  %s6, 1024, %s386, [#allocation10], 64, 64, 4
        $region36: #{tpu_custom_call.1} parent=11 // pred_fallthru
          _
        // Predicated region
        $region37: #{tpu_custom_call.1} parent=11 // pred_check
          %p392 = pneg %p199
        $region38: #{tpu_custom_call.1} parent=11 // pred_check_branch
          %394 = sbr.rel (%p392) target = $region40
        $region39: #{tpu_custom_call.1} parent=11 // pred_region
          _
        $region40: #{tpu_custom_call.1} parent=11 // pred_fallthru
          _
        // Predicated region
        $region41: #{tpu_custom_call.1} parent=11 // pred_check
          %p395 = pneg %p220
        $region42: #{tpu_custom_call.1} parent=11 // pred_check_branch
          %397 = sbr.rel (%p395) target = $region44
        $region43: #{tpu_custom_call.1} parent=11 // pred_region
          %s399 = ssub.s32 1024, 1024
          %400 = vsyncadd [#allocation13], %s399
          %s401 = sshll.u32 [#allocation12], 4
          %s402 = int_to_ptr.vmem [resolvable:$true] %s401
          %407 = dma.hbm_to_vmem [thread:$0]  %s8, 1024, %s402, [#allocation13], 64, 64, 4
        $region44: #{tpu_custom_call.1} parent=11 // pred_fallthru
          _
        // Predicated region
        $region45: #{tpu_custom_call.1} parent=11 // pred_check
          %p408 = pneg %p241
        $region46: #{tpu_custom_call.1} parent=11 // pred_check_branch
          %410 = sbr.rel (%p408) target = $region48
        $region47: #{tpu_custom_call.1} parent=11 // pred_region
          _
        $region48: #{tpu_custom_call.1} parent=11 // pred_fallthru
          _
        // Predicated region
        $region49: #{tpu_custom_call.1} parent=11 // pred_check
          %p411 = pneg %p262
        $region50: #{tpu_custom_call.1} parent=11 // pred_check_branch
          %413 = sbr.rel (%p411) target = $region52
        $region51: #{tpu_custom_call.1} parent=11 // pred_region
          _
        $region52: #{tpu_custom_call.1} parent=11 // pred_fallthru
          _
        // Predicated region
        $region53: #{tpu_custom_call.1} parent=11 // pred_check
          %p414 = pneg %p283
        $region54: #{tpu_custom_call.1} parent=11 // pred_check_branch
          %416 = sbr.rel (%p414) target = $region56
        $region55: #{tpu_custom_call.1} parent=11 // pred_region
          _
        $region56: #{tpu_custom_call.1} parent=11 // pred_fallthru
          _
      $region12: #{tpu_custom_call.1} parent=5 // pred_fallthru
        _
      %p417 = scmp.lt.s32.totalorder %s26, 2
      // Predicated region
      $region57: #{tpu_custom_call.1} parent=5 // pred_check
        %p418 = pneg %p417
      $region58: #{tpu_custom_call.1} parent=5 // pred_check_branch
        %420 = sbr.rel (%p418) target = $region60
      $region59: #{tpu_custom_call.1} parent=5 // pred_region
        // Predicated region
        $region61: #{tpu_custom_call.1} parent=59 // pred_check
          %p421 = pneg %p46
        $region62: #{tpu_custom_call.1} parent=59 // pred_check_branch
          %423 = sbr.rel (%p421) target = $region64
        $region63: #{tpu_custom_call.1} parent=59 // pred_region
          %p424 = scmp.lt.s32.totalorder %s26, 1
          %s425 = scalar_select %p424, %s26, 1
          %s426 = smul.addr %s425, 8
          %s427 = scalar_lea.vmem %s0, %s426
        $region64: #{tpu_custom_call.1} parent=59 // pred_fallthru
          _
      $region60: #{tpu_custom_call.1} parent=5 // pred_fallthru
        _
      %p428 = scmp.le.s32.totalorder 1, %s26
      %p429 = scmp.lt.s32.totalorder %s26, 3
      %p430 = pnand %p428, %p429
      %p431 = pneg %p430
      // Predicated region
      $region65: #{tpu_custom_call.1} parent=5 // pred_check
        _
      $region66: #{tpu_custom_call.1} parent=5 // pred_check_branch
        %433 = sbr.rel (%p430) target = $region68
      $region67: #{tpu_custom_call.1} parent=5 // pred_region
        %s434 = ssub.s32 %s26, 1
        // Predicated region
        $region69: #{tpu_custom_call.1} parent=67 // pred_check
          %p435 = pneg %p94
        $region70: #{tpu_custom_call.1} parent=67 // pred_check_branch
          %437 = sbr.rel (%p435) target = $region72
        $region71: #{tpu_custom_call.1} parent=67 // pred_region
          %438 = dma.done [#allocation4], 1024
        $region72: #{tpu_custom_call.1} parent=67 // pred_fallthru
          _
        // Predicated region
        $region73: #{tpu_custom_call.1} parent=67 // pred_check
          %p439 = pneg %p115
        $region74: #{tpu_custom_call.1} parent=67 // pred_check_branch
          %441 = sbr.rel (%p439) target = $region76
        $region75: #{tpu_custom_call.1} parent=67 // pred_region
          %442 = dma.done [#allocation7], 1024
        $region76: #{tpu_custom_call.1} parent=67 // pred_fallthru
          _
        // Predicated region
        $region77: #{tpu_custom_call.1} parent=67 // pred_check
          %p443 = pneg %p136
        $region78: #{tpu_custom_call.1} parent=67 // pred_check_branch
          %445 = sbr.rel (%p443) target = $region80
        $region79: #{tpu_custom_call.1} parent=67 // pred_region
          %446 = dma.done [#allocation7], 1024
        $region80: #{tpu_custom_call.1} parent=67 // pred_fallthru
          _
        // Predicated region
        $region81: #{tpu_custom_call.1} parent=67 // pred_check
          %p447 = pneg %p157
        $region82: #{tpu_custom_call.1} parent=67 // pred_check_branch
          %449 = sbr.rel (%p447) target = $region84
        $region83: #{tpu_custom_call.1} parent=67 // pred_region
          %450 = dma.done [#allocation10], 1024
        $region84: #{tpu_custom_call.1} parent=67 // pred_fallthru
          _
        // Predicated region
        $region85: #{tpu_custom_call.1} parent=67 // pred_check
          %p451 = pneg %p178
        $region86: #{tpu_custom_call.1} parent=67 // pred_check_branch
          %453 = sbr.rel (%p451) target = $region88
        $region87: #{tpu_custom_call.1} parent=67 // pred_region
          %454 = dma.done [#allocation10], 1024
        $region88: #{tpu_custom_call.1} parent=67 // pred_fallthru
          _
        // Predicated region
        $region89: #{tpu_custom_call.1} parent=67 // pred_check
          %p455 = pneg %p220
        $region90: #{tpu_custom_call.1} parent=67 // pred_check_branch
          %457 = sbr.rel (%p455) target = $region92
        $region91: #{tpu_custom_call.1} parent=67 // pred_region
          %458 = dma.done [#allocation13], 1024
        $region92: #{tpu_custom_call.1} parent=67 // pred_fallthru
          _
        %p459 = scmp.lt.s32.totalorder %s31, 1
        %s460 = scalar_select %p459, %s31, 1
        %s461 = smul.addr %s460, 8
        %s462 = scalar_lea.vmem %s0, %s461
        %p463 = pneg %p52
        %p464 = pneg %p49
        %p465 = pneg %p73
        %p466 = pneg %p70
        %p467 = pneg %p94
        %p468 = pneg %p91
        %p469 = pneg %p115
        %p470 = pneg %p112
        %p471 = pneg %p136
        %p472 = pneg %p133
        %p473 = pneg %p157
        %p474 = pneg %p154
        %p475 = pneg %p178
        %p476 = pneg %p175
        %p477 = pneg %p199
        %p478 = pneg %p196
        %p479 = pneg %p220
        %p480 = pneg %p217
        %p481 = pneg %p241
        %p482 = pneg %p238
        %p483 = pneg %p262
        %p484 = pneg %p259
        %p485 = pneg %p283
        %p486 = pneg %p280
        %p487 = pneg %p309
        %p488 = pneg %p306
        %s489 = sand.u32 %s296, 1
        %s490 = scalar_lea.sflag [#allocation5], %s489
        %s491 = sand.u32 %s296, 1
        %s492 = scalar_lea.vmem [#allocation14], %s491
        %p493 = scmp.lt.s32.totalorder %s31, 1
        %s494 = scalar_select %p493, %s31, 1
        %s495 = smul.addr %s494, 8
        %s496 = scalar_lea.vmem %s0, %s495
        %v498 = vld [vmem:[%s496] sm:$0xff]
        %v499 = vlaneseq
        %v500 = vand.u32 %v499, 127
        %501 = vset.pattern.permute.xlu0 0
        %502 = vperm.xlu0 %501, %v498
        %v503 = vpop.permute.xlu0 %502
        %vm504 = vcmp.eq.s32.totalorder %v503, %v500
        %v505 = vsel %vm504, 1.0, 0.0
        %v506 = vpack.c.bf16 %v505, %v505
        %v507 = vld [vmem:[#allocation3] sm:$0xf]
        %v508 = vld [vmem:[#allocation3 + $0x4] sm:$0xf]
        %v509 = vld [vmem:[#allocation3 + $0x8] sm:$0xf]
        %v510 = vld [vmem:[#allocation3 + $0xc] sm:$0xf]
        %v511 = vld [vmem:[#allocation3 + $0x10] sm:$0xf]
        %v512 = vld [vmem:[#allocation3 + $0x14] sm:$0xf]
        %v513 = vld [vmem:[#allocation3 + $0x18] sm:$0xf]
        %v514 = vld [vmem:[#allocation3 + $0x1c] sm:$0xf]
        %v515 = vld [vmem:[#allocation3 + $0x20] sm:$0xf]
        %v516 = vld [vmem:[#allocation3 + $0x24] sm:$0xf]
        %v517 = vld [vmem:[#allocation3 + $0x28] sm:$0xf]
        %v518 = vld [vmem:[#allocation3 + $0x2c] sm:$0xf]
        %v519 = vld [vmem:[#allocation3 + $0x30] sm:$0xf]
        %v520 = vld [vmem:[#allocation3 + $0x34] sm:$0xf]
        %v521 = vld [vmem:[#allocation3 + $0x38] sm:$0xf]
        %v522 = vld [vmem:[#allocation3 + $0x3c] sm:$0xf]
        %v539 = vunpack.c.l.b16 %v507
        %v540 = vunpack.c.l.b16 %v508
        %v541 = vunpack.c.l.b16 %v509
        %v542 = vunpack.c.l.b16 %v510
        %v543 = vunpack.c.l.b16 %v511
        %v544 = vunpack.c.l.b16 %v512
        %v545 = vunpack.c.l.b16 %v513
        %v546 = vunpack.c.l.b16 %v514
        %v547 = vunpack.c.l.b16 %v515
        %v548 = vunpack.c.l.b16 %v516
        %v549 = vunpack.c.l.b16 %v517
        %v550 = vunpack.c.l.b16 %v518
        %v551 = vunpack.c.l.b16 %v519
        %v552 = vunpack.c.l.b16 %v520
        %v553 = vunpack.c.l.b16 %v521
        %v554 = vunpack.c.l.b16 %v522
        %v555 = vpack.c.b16 %v540, %v539
        %v556 = vpack.c.b16 %v542, %v541
        %v557 = vpack.c.b16 %v544, %v543
        %v558 = vpack.c.b16 %v546, %v545
        %v559 = vpack.c.b16 %v548, %v547
        %v560 = vpack.c.b16 %v550, %v549
        %v561 = vpack.c.b16 %v552, %v551
        %v562 = vpack.c.b16 %v554, %v553
        %571 = vmatprep.subr.bf16.mxu0 0
        %572 = vmatpush1.bf16.msra.mxu0 %v555
        %573 = vmatprep.subr.bf16.mxu0 0
        %574 = vmatpush1.bf16.msra.mxu0 %v556
        %575 = vmatprep.subr.bf16.mxu0 0
        %576 = vmatpush1.bf16.msra.mxu0 %v557
        %577 = vmatprep.subr.bf16.mxu0 0
        %578 = vmatpush1.bf16.msra.mxu0 %v558
        %579 = vmatprep.subr.bf16.mxu0 0
        %580 = vmatpush1.bf16.msra.mxu0 %v559
        %581 = vmatprep.subr.bf16.mxu0 0
        %582 = vmatpush1.bf16.msra.mxu0 %v560
        %583 = vmatprep.subr.bf16.mxu0 0
        %584 = vmatpush1.bf16.msra.mxu0 %v561
        %585 = vmatprep.subr.bf16.mxu0 0
        %586 = vmatpush1.bf16.msra.mxu0 %v562
        %587 = vmatprep.subr.bf16.mxu0 0
        %588 = vmatpush1.bf16.msra.mxu0 0
        %589 = vmatprep.subr.bf16.mxu0 0
        %590 = vmatpush1.bf16.msra.mxu0 0
        %591 = vmatprep.subr.bf16.mxu0 0
        %592 = vmatpush1.bf16.msra.mxu0 0
        %593 = vmatprep.subr.bf16.mxu0 0
        %594 = vmatpush1.bf16.msra.mxu0 0
        %595 = vmatprep.subr.bf16.mxu0 0
        %596 = vmatpush1.bf16.msra.mxu0 0
        %597 = vmatprep.subr.bf16.mxu0 0
        %598 = vmatpush1.bf16.msra.mxu0 0
        %599 = vmatprep.subr.bf16.mxu0 0
        %600 = vmatpush1.bf16.msra.mxu0 0
        %601 = vmatprep.subr.bf16.mxu0 0
        %602 = vmatpush1.bf16.msra.mxu0 0
        %603 = vmatprep.mubr.bf16.mxu0 0
        %604 = vmatmul.mubr.bf16.gmra.mrb[0].mxu0 %v506
        %v605 = vpop.f32.mrb[0].mxu0
        %v606 = vadd.f32 0.0, %v605
        %v607 = vpop.f32.mrb[0].mxu0
        %v608 = vpop.f32.mrb[0].mxu0
        %v609 = vpop.f32.mrb[0].mxu0
        %610 = vdwg.mxu0
        %v611 = vpack.c.bf16 %v606, %v606
        %v612 = vld [vmem:[#allocation6] sm:$0xf]
        %v613 = vld [vmem:[#allocation6 + $0x4] sm:$0xf]
        %v614 = vld [vmem:[#allocation6 + $0x8] sm:$0xf]
        %v615 = vld [vmem:[#allocation6 + $0xc] sm:$0xf]
        %v616 = vld [vmem:[#allocation6 + $0x10] sm:$0xf]
        %v617 = vld [vmem:[#allocation6 + $0x14] sm:$0xf]
        %v618 = vld [vmem:[#allocation6 + $0x18] sm:$0xf]
        %v619 = vld [vmem:[#allocation6 + $0x1c] sm:$0xf]
        %v620 = vld [vmem:[#allocation6 + $0x20] sm:$0xf]
        %v621 = vld [vmem:[#allocation6 + $0x24] sm:$0xf]
        %v622 = vld [vmem:[#allocation6 + $0x28] sm:$0xf]
        %v623 = vld [vmem:[#allocation6 + $0x2c] sm:$0xf]
        %v624 = vld [vmem:[#allocation6 + $0x30] sm:$0xf]
        %v625 = vld [vmem:[#allocation6 + $0x34] sm:$0xf]
        %v626 = vld [vmem:[#allocation6 + $0x38] sm:$0xf]
        %v627 = vld [vmem:[#allocation6 + $0x3c] sm:$0xf]
        %v644 = vunpack.c.l.b16 %v612
        %v645 = vunpack.c.l.b16 %v613
        %v646 = vunpack.c.l.b16 %v614
        %v647 = vunpack.c.l.b16 %v615
        %v648 = vunpack.c.l.b16 %v616
        %v649 = vunpack.c.l.b16 %v617
        %v650 = vunpack.c.l.b16 %v618
        %v651 = vunpack.c.l.b16 %v619
        %v652 = vunpack.c.l.b16 %v620
        %v653 = vunpack.c.l.b16 %v621
        %v654 = vunpack.c.l.b16 %v622
        %v655 = vunpack.c.l.b16 %v623
        %v656 = vunpack.c.l.b16 %v624
        %v657 = vunpack.c.l.b16 %v625
        %v658 = vunpack.c.l.b16 %v626
        %v659 = vunpack.c.l.b16 %v627
        %v660 = vpack.c.b16 %v645, %v644
        %v661 = vpack.c.b16 %v647, %v646
        %v662 = vpack.c.b16 %v649, %v648
        %v663 = vpack.c.b16 %v651, %v650
        %v664 = vpack.c.b16 %v653, %v652
        %v665 = vpack.c.b16 %v655, %v654
        %v666 = vpack.c.b16 %v657, %v656
        %v667 = vpack.c.b16 %v659, %v658
        %676 = vmatprep.subr.bf16.mxu0 0
        %677 = vmatpush1.bf16.msra.mxu0 %v660
        %678 = vmatprep.subr.bf16.mxu0 0
        %679 = vmatpush1.bf16.msra.mxu0 %v661
        %680 = vmatprep.subr.bf16.mxu0 0
        %681 = vmatpush1.bf16.msra.mxu0 %v662
        %682 = vmatprep.subr.bf16.mxu0 0
        %683 = vmatpush1.bf16.msra.mxu0 %v663
        %684 = vmatprep.subr.bf16.mxu0 0
        %685 = vmatpush1.bf16.msra.mxu0 %v664
        %686 = vmatprep.subr.bf16.mxu0 0
        %687 = vmatpush1.bf16.msra.mxu0 %v665
        %688 = vmatprep.subr.bf16.mxu0 0
        %689 = vmatpush1.bf16.msra.mxu0 %v666
        %690 = vmatprep.subr.bf16.mxu0 0
        %691 = vmatpush1.bf16.msra.mxu0 %v667
        %692 = vmatprep.subr.bf16.mxu0 0
        %693 = vmatpush1.bf16.msra.mxu0 0
        %694 = vmatprep.subr.bf16.mxu0 0
        %695 = vmatpush1.bf16.msra.mxu0 0
        %696 = vmatprep.subr.bf16.mxu0 0
        %697 = vmatpush1.bf16.msra.mxu0 0
        %698 = vmatprep.subr.bf16.mxu0 0
        %699 = vmatpush1.bf16.msra.mxu0 0
        %700 = vmatprep.subr.bf16.mxu0 0
        %701 = vmatpush1.bf16.msra.mxu0 0
        %702 = vmatprep.subr.bf16.mxu0 0
        %703 = vmatpush1.bf16.msra.mxu0 0
        %704 = vmatprep.subr.bf16.mxu0 0
        %705 = vmatpush1.bf16.msra.mxu0 0
        %706 = vmatprep.subr.bf16.mxu0 0
        %707 = vmatpush1.bf16.msra.mxu0 0
        %708 = vmatprep.mubr.bf16.mxu0 0
        %709 = vmatmul.mubr.bf16.gmra.mrb[0].mxu0 %v611
        %v710 = vpop.f32.mrb[0].mxu0
        %v711 = vadd.f32 0.0, %v710
        %v712 = vpop.f32.mrb[0].mxu0
        %v713 = vpop.f32.mrb[0].mxu0
        %v714 = vpop.f32.mrb[0].mxu0
        %715 = vdwg.mxu0
        %v716 = vld [vmem:[#allocation8] sm:$0xf]
        %v717 = vld [vmem:[#allocation8 + $0x4] sm:$0xf]
        %v718 = vld [vmem:[#allocation8 + $0x8] sm:$0xf]
        %v719 = vld [vmem:[#allocation8 + $0xc] sm:$0xf]
        %v720 = vld [vmem:[#allocation8 + $0x10] sm:$0xf]
        %v721 = vld [vmem:[#allocation8 + $0x14] sm:$0xf]
        %v722 = vld [vmem:[#allocation8 + $0x18] sm:$0xf]
        %v723 = vld [vmem:[#allocation8 + $0x1c] sm:$0xf]
        %v724 = vld [vmem:[#allocation8 + $0x20] sm:$0xf]
        %v725 = vld [vmem:[#allocation8 + $0x24] sm:$0xf]
        %v726 = vld [vmem:[#allocation8 + $0x28] sm:$0xf]
        %v727 = vld [vmem:[#allocation8 + $0x2c] sm:$0xf]
        %v728 = vld [vmem:[#allocation8 + $0x30] sm:$0xf]
        %v729 = vld [vmem:[#allocation8 + $0x34] sm:$0xf]
        %v730 = vld [vmem:[#allocation8 + $0x38] sm:$0xf]
        %v731 = vld [vmem:[#allocation8 + $0x3c] sm:$0xf]
        %v748 = vunpack.c.l.b16 %v716
        %v749 = vunpack.c.l.b16 %v717
        %v750 = vunpack.c.l.b16 %v718
        %v751 = vunpack.c.l.b16 %v719
        %v752 = vunpack.c.l.b16 %v720
        %v753 = vunpack.c.l.b16 %v721
        %v754 = vunpack.c.l.b16 %v722
        %v755 = vunpack.c.l.b16 %v723
        %v756 = vunpack.c.l.b16 %v724
        %v757 = vunpack.c.l.b16 %v725
        %v758 = vunpack.c.l.b16 %v726
        %v759 = vunpack.c.l.b16 %v727
        %v760 = vunpack.c.l.b16 %v728
        %v761 = vunpack.c.l.b16 %v729
        %v762 = vunpack.c.l.b16 %v730
        %v763 = vunpack.c.l.b16 %v731
        %v764 = vpack.c.b16 %v749, %v748
        %v765 = vpack.c.b16 %v751, %v750
        %v766 = vpack.c.b16 %v753, %v752
        %v767 = vpack.c.b16 %v755, %v754
        %v768 = vpack.c.b16 %v757, %v756
        %v769 = vpack.c.b16 %v759, %v758
        %v770 = vpack.c.b16 %v761, %v760
        %v771 = vpack.c.b16 %v763, %v762
        %780 = vmatprep.subr.bf16.mxu0 0
        %781 = vmatpush1.bf16.msra.mxu0 %v764
        %782 = vmatprep.subr.bf16.mxu0 0
        %783 = vmatpush1.bf16.msra.mxu0 %v765
        %784 = vmatprep.subr.bf16.mxu0 0
        %785 = vmatpush1.bf16.msra.mxu0 %v766
        %786 = vmatprep.subr.bf16.mxu0 0
        %787 = vmatpush1.bf16.msra.mxu0 %v767
        %788 = vmatprep.subr.bf16.mxu0 0
        %789 = vmatpush1.bf16.msra.mxu0 %v768
        %790 = vmatprep.subr.bf16.mxu0 0
        %791 = vmatpush1.bf16.msra.mxu0 %v769
        %792 = vmatprep.subr.bf16.mxu0 0
        %793 = vmatpush1.bf16.msra.mxu0 %v770
        %794 = vmatprep.subr.bf16.mxu0 0
        %795 = vmatpush1.bf16.msra.mxu0 %v771
        %796 = vmatprep.subr.bf16.mxu0 0
        %797 = vmatpush1.bf16.msra.mxu0 0
        %798 = vmatprep.subr.bf16.mxu0 0
        %799 = vmatpush1.bf16.msra.mxu0 0
        %800 = vmatprep.subr.bf16.mxu0 0
        %801 = vmatpush1.bf16.msra.mxu0 0
        %802 = vmatprep.subr.bf16.mxu0 0
        %803 = vmatpush1.bf16.msra.mxu0 0
        %804 = vmatprep.subr.bf16.mxu0 0
        %805 = vmatpush1.bf16.msra.mxu0 0
        %806 = vmatprep.subr.bf16.mxu0 0
        %807 = vmatpush1.bf16.msra.mxu0 0
        %808 = vmatprep.subr.bf16.mxu0 0
        %809 = vmatpush1.bf16.msra.mxu0 0
        %810 = vmatprep.subr.bf16.mxu0 0
        %811 = vmatpush1.bf16.msra.mxu0 0
        %812 = vmatprep.mubr.bf16.mxu0 0
        %813 = vmatmul.mubr.bf16.gmra.mrb[0].mxu0 %v611
        %v814 = vpop.f32.mrb[0].mxu0
        %v815 = vadd.f32 0.0, %v814
        %v816 = vpop.f32.mrb[0].mxu0
        %v817 = vpop.f32.mrb[0].mxu0
        %v818 = vpop.f32.mrb[0].mxu0
        %819 = vdwg.mxu0
        %v820 = vld [vmem:[#allocation9] sm:$0xf]
        %v821 = vld [vmem:[#allocation9 + $0x4] sm:$0xf]
        %v822 = vld [vmem:[#allocation9 + $0x8] sm:$0xf]
        %v823 = vld [vmem:[#allocation9 + $0xc] sm:$0xf]
        %v824 = vld [vmem:[#allocation9 + $0x10] sm:$0xf]
        %v825 = vld [vmem:[#allocation9 + $0x14] sm:$0xf]
        %v826 = vld [vmem:[#allocation9 + $0x18] sm:$0xf]
        %v827 = vld [vmem:[#allocation9 + $0x1c] sm:$0xf]
        %v828 = vld [vmem:[#allocation9 + $0x20] sm:$0xf]
        %v829 = vld [vmem:[#allocation9 + $0x24] sm:$0xf]
        %v830 = vld [vmem:[#allocation9 + $0x28] sm:$0xf]
        %v831 = vld [vmem:[#allocation9 + $0x2c] sm:$0xf]
        %v832 = vld [vmem:[#allocation9 + $0x30] sm:$0xf]
        %v833 = vld [vmem:[#allocation9 + $0x34] sm:$0xf]
        %v834 = vld [vmem:[#allocation9 + $0x38] sm:$0xf]
        %v835 = vld [vmem:[#allocation9 + $0x3c] sm:$0xf]
        %v852 = vunpack.c.l.b16 %v820
        %v853 = vunpack.c.l.b16 %v821
        %v854 = vunpack.c.l.b16 %v822
        %v855 = vunpack.c.l.b16 %v823
        %v856 = vunpack.c.l.b16 %v824
        %v857 = vunpack.c.l.b16 %v825
        %v858 = vunpack.c.l.b16 %v826
        %v859 = vunpack.c.l.b16 %v827
        %v860 = vunpack.c.l.b16 %v828
        %v861 = vunpack.c.l.b16 %v829
        %v862 = vunpack.c.l.b16 %v830
        %v863 = vunpack.c.l.b16 %v831
        %v864 = vunpack.c.l.b16 %v832
        %v865 = vunpack.c.l.b16 %v833
        %v866 = vunpack.c.l.b16 %v834
        %v867 = vunpack.c.l.b16 %v835
        %v868 = vpack.c.b16 %v853, %v852
        %v869 = vpack.c.b16 %v855, %v854
        %v870 = vpack.c.b16 %v857, %v856
        %v871 = vpack.c.b16 %v859, %v858
        %v872 = vpack.c.b16 %v861, %v860
        %v873 = vpack.c.b16 %v863, %v862
        %v874 = vpack.c.b16 %v865, %v864
        %v875 = vpack.c.b16 %v867, %v866
        %884 = vmatprep.subr.bf16.mxu0 0
        %885 = vmatpush1.bf16.msra.mxu0 %v868
        %886 = vmatprep.subr.bf16.mxu0 0
        %887 = vmatpush1.bf16.msra.mxu0 %v869
        %888 = vmatprep.subr.bf16.mxu0 0
        %889 = vmatpush1.bf16.msra.mxu0 %v870
        %890 = vmatprep.subr.bf16.mxu0 0
        %891 = vmatpush1.bf16.msra.mxu0 %v871
        %892 = vmatprep.subr.bf16.mxu0 0
        %893 = vmatpush1.bf16.msra.mxu0 %v872
        %894 = vmatprep.subr.bf16.mxu0 0
        %895 = vmatpush1.bf16.msra.mxu0 %v873
        %896 = vmatprep.subr.bf16.mxu0 0
        %897 = vmatpush1.bf16.msra.mxu0 %v874
        %898 = vmatprep.subr.bf16.mxu0 0
        %899 = vmatpush1.bf16.msra.mxu0 %v875
        %900 = vmatprep.subr.bf16.mxu0 0
        %901 = vmatpush1.bf16.msra.mxu0 0
        %902 = vmatprep.subr.bf16.mxu0 0
        %903 = vmatpush1.bf16.msra.mxu0 0
        %904 = vmatprep.subr.bf16.mxu0 0
        %905 = vmatpush1.bf16.msra.mxu0 0
        %906 = vmatprep.subr.bf16.mxu0 0
        %907 = vmatpush1.bf16.msra.mxu0 0
        %908 = vmatprep.subr.bf16.mxu0 0
        %909 = vmatpush1.bf16.msra.mxu0 0
        %910 = vmatprep.subr.bf16.mxu0 0
        %911 = vmatpush1.bf16.msra.mxu0 0
        %912 = vmatprep.subr.bf16.mxu0 0
        %913 = vmatpush1.bf16.msra.mxu0 0
        %914 = vmatprep.subr.bf16.mxu0 0
        %915 = vmatpush1.bf16.msra.mxu0 0
        %916 = vmatprep.mubr.bf16.mxu0 0
        %917 = vmatmul.mubr.bf16.gmra.mrb[0].mxu0 %v611
        %v918 = vpop.f32.mrb[0].mxu0
        %v919 = vadd.f32 0.0, %v918
        %v920 = vpop.f32.mrb[0].mxu0
        %v921 = vpop.f32.mrb[0].mxu0
        %v922 = vpop.f32.mrb[0].mxu0
        %923 = vdwg.mxu0
        %v924 = vpack.c.bf16 %v711, %v711
        %v925 = vpack.c.bf16 %v815, %v815
        %v926 = vld [vmem:[%s1] sm:$0xff]
        %927 = vmatprep.subr.bf16.mxu0 0
        %928 = vmatpush1.bf16.xpose.msra.mxu0 %v925
        %929 = vmatprep.subr.bf16.mxu0 0
        %930 = vmatpush1.bf16.xpose.msra.mxu0 0
        %931 = vmatprep.subr.bf16.mxu0 0
        %932 = vmatpush1.bf16.xpose.msra.mxu0 0
        %933 = vmatprep.subr.bf16.mxu0 0
        %934 = vmatpush1.bf16.xpose.msra.mxu0 0
        %935 = vmatprep.subr.bf16.mxu0 0
        %936 = vmatpush1.bf16.xpose.msra.mxu0 0
        %937 = vmatprep.subr.bf16.mxu0 0
        %938 = vmatpush1.bf16.xpose.msra.mxu0 0
        %939 = vmatprep.subr.bf16.mxu0 0
        %940 = vmatpush1.bf16.xpose.msra.mxu0 0
        %941 = vmatprep.subr.bf16.mxu0 0
        %942 = vmatpush1.bf16.xpose.msra.mxu0 0
        %943 = vmatprep.subr.bf16.mxu0 0
        %944 = vmatpush1.bf16.xpose.msra.mxu0 0
        %945 = vmatprep.subr.bf16.mxu0 0
        %946 = vmatpush1.bf16.xpose.msra.mxu0 0
        %947 = vmatprep.subr.bf16.mxu0 0
        %948 = vmatpush1.bf16.xpose.msra.mxu0 0
        %949 = vmatprep.subr.bf16.mxu0 0
        %950 = vmatpush1.bf16.xpose.msra.mxu0 0
        %951 = vmatprep.subr.bf16.mxu0 0
        %952 = vmatpush1.bf16.xpose.msra.mxu0 0
        %953 = vmatprep.subr.bf16.mxu0 0
        %954 = vmatpush1.bf16.xpose.msra.mxu0 0
        %955 = vmatprep.subr.bf16.mxu0 0
        %956 = vmatpush1.bf16.xpose.msra.mxu0 0
        %957 = vmatprep.subr.bf16.mxu0 0
        %958 = vmatpush1.bf16.xpose.msra.mxu0 0
        %959 = vmatprep.mubr.bf16.mxu0 0
        %960 = vmatmul.mubr.bf16.gmra.mrb[0].mxu0 %v924
        %v961 = vpop.f32.mrb[0].mxu0
        %v962 = vadd.f32 %v926, %v961
        %v963 = vpop.f32.mrb[0].mxu0
        %v964 = vpop.f32.mrb[0].mxu0
        %v965 = vpop.f32.mrb[0].mxu0
        %966 = vdwg.mxu0
        %vm967 = vcmask 64512
        %v968 = vsel %vm967, %v962, -inf
        %969 = vmax.xlane.f32.xlu0 %v968
        %v970 = vpop.xlane.xlu0 %969
        %v971 = vsub.f32 %v962, %v970
        %v972 = vmul.f32 %v971, 1.442695
        %v973 = vpow.pop %v972
        %v974 = vsel %vm967, %v973, 0.0
        %975 = vadd.xlane.f32.xlu0 %v974
        %v976 = vpop.xlane.xlu0 %975
        %v977 = vrcp.pop %v976
        %v978 = vmul.f32 %v973, %v977
        %v979 = vpack.c.bf16 %v978, %v978
        %v980 = vpack.c.bf16 %v919, %v919
        %v982 = vsel %vm967, %v979, 0
        %vm984 = vcmask 1043456
        %v986 = vsel %vm984, %v980, 0
        %988 = vmatprep.subr.bf16.mxu0 0
        %989 = vmatpush1.bf16.msra.mxu0 %v986
        %990 = vmatprep.subr.bf16.mxu0 0
        %991 = vmatpush1.bf16.msra.mxu0 0
        %992 = vmatprep.subr.bf16.mxu0 0
        %993 = vmatpush1.bf16.msra.mxu0 0
        %994 = vmatprep.subr.bf16.mxu0 0
        %995 = vmatpush1.bf16.msra.mxu0 0
        %996 = vmatprep.subr.bf16.mxu0 0
        %997 = vmatpush1.bf16.msra.mxu0 0
        %998 = vmatprep.subr.bf16.mxu0 0
        %999 = vmatpush1.bf16.msra.mxu0 0
        %1000 = vmatprep.subr.bf16.mxu0 0
        %1001 = vmatpush1.bf16.msra.mxu0 0
        %1002 = vmatprep.subr.bf16.mxu0 0
        %1003 = vmatpush1.bf16.msra.mxu0 0
        %1004 = vmatprep.subr.bf16.mxu0 0
        %1005 = vmatpush1.bf16.msra.mxu0 0
        %1006 = vmatprep.subr.bf16.mxu0 0
        %1007 = vmatpush1.bf16.msra.mxu0 0
        %1008 = vmatprep.subr.bf16.mxu0 0
        %1009 = vmatpush1.bf16.msra.mxu0 0
        %1010 = vmatprep.subr.bf16.mxu0 0
        %1011 = vmatpush1.bf16.msra.mxu0 0
        %1012 = vmatprep.subr.bf16.mxu0 0
        %1013 = vmatpush1.bf16.msra.mxu0 0
        %1014 = vmatprep.subr.bf16.mxu0 0
        %1015 = vmatpush1.bf16.msra.mxu0 0
        %1016 = vmatprep.subr.bf16.mxu0 0
        %1017 = vmatpush1.bf16.msra.mxu0 0
        %1018 = vmatprep.subr.bf16.mxu0 0
        %1019 = vmatpush1.bf16.msra.mxu0 0
        %1020 = vmatprep.mubr.bf16.mxu0 0
        %1021 = vmatmul.mubr.bf16.gmra.mrb[0].mxu0 %v982
        %v1022 = vpop.f32.mrb[0].mxu0
        %v1023 = vadd.f32 0.0, %v1022
        %v1024 = vpop.f32.mrb[0].mxu0
        %v1025 = vpop.f32.mrb[0].mxu0
        %v1026 = vpop.f32.mrb[0].mxu0
        %1027 = vdwg.mxu0
        %v1028 = vpack.c.bf16 %v1023, %v1023
        %v1029 = vld [vmem:[#allocation11] sm:$0xf]
        %v1030 = vld [vmem:[#allocation11 + $0x4] sm:$0xf]
        %v1031 = vld [vmem:[#allocation11 + $0x8] sm:$0xf]
        %v1032 = vld [vmem:[#allocation11 + $0xc] sm:$0xf]
        %v1033 = vld [vmem:[#allocation11 + $0x10] sm:$0xf]
        %v1034 = vld [vmem:[#allocation11 + $0x14] sm:$0xf]
        %v1035 = vld [vmem:[#allocation11 + $0x18] sm:$0xf]
        %v1036 = vld [vmem:[#allocation11 + $0x1c] sm:$0xf]
        %v1037 = vld [vmem:[#allocation11 + $0x20] sm:$0xf]
        %v1038 = vld [vmem:[#allocation11 + $0x24] sm:$0xf]
        %v1039 = vld [vmem:[#allocation11 + $0x28] sm:$0xf]
        %v1040 = vld [vmem:[#allocation11 + $0x2c] sm:$0xf]
        %v1041 = vld [vmem:[#allocation11 + $0x30] sm:$0xf]
        %v1042 = vld [vmem:[#allocation11 + $0x34] sm:$0xf]
        %v1043 = vld [vmem:[#allocation11 + $0x38] sm:$0xf]
        %v1044 = vld [vmem:[#allocation11 + $0x3c] sm:$0xf]
        %v1045 = vld [vmem:[%s7] sm:$0x1]
        %v1047 = vlaneseq
        %v1048 = vshrl.u32 %v1047, 7
        %v1049 = vsub.s32 0, %v1048
        %v1050 = vrot.slane %v1045, %v1049
        %v1068 = vunpack.c.l.b16 %v1029
        %v1069 = vunpack.c.l.b16 %v1030
        %v1070 = vunpack.c.l.b16 %v1031
        %v1071 = vunpack.c.l.b16 %v1032
        %v1072 = vunpack.c.l.b16 %v1033
        %v1073 = vunpack.c.l.b16 %v1034
        %v1074 = vunpack.c.l.b16 %v1035
        %v1075 = vunpack.c.l.b16 %v1036
        %v1076 = vunpack.c.l.b16 %v1037
        %v1077 = vunpack.c.l.b16 %v1038
        %v1078 = vunpack.c.l.b16 %v1039
        %v1079 = vunpack.c.l.b16 %v1040
        %v1080 = vunpack.c.l.b16 %v1041
        %v1081 = vunpack.c.l.b16 %v1042
        %v1082 = vunpack.c.l.b16 %v1043
        %v1083 = vunpack.c.l.b16 %v1044
        %v1084 = vpack.c.b16 %v1069, %v1068
        %v1085 = vpack.c.b16 %v1071, %v1070
        %v1086 = vpack.c.b16 %v1073, %v1072
        %v1087 = vpack.c.b16 %v1075, %v1074
        %v1088 = vpack.c.b16 %v1077, %v1076
        %v1089 = vpack.c.b16 %v1079, %v1078
        %v1090 = vpack.c.b16 %v1081, %v1080
        %v1091 = vpack.c.b16 %v1083, %v1082
        %1100 = vmatprep.subr.bf16.mxu0 0
        %1101 = vmatpush1.bf16.msra.mxu0 %v1084
        %1102 = vmatprep.subr.bf16.mxu0 0
        %1103 = vmatpush1.bf16.msra.mxu0 %v1085
        %1104 = vmatprep.subr.bf16.mxu0 0
        %1105 = vmatpush1.bf16.msra.mxu0 %v1086
        %1106 = vmatprep.subr.bf16.mxu0 0
        %1107 = vmatpush1.bf16.msra.mxu0 %v1087
        %1108 = vmatprep.subr.bf16.mxu0 0
        %1109 = vmatpush1.bf16.msra.mxu0 %v1088
        %1110 = vmatprep.subr.bf16.mxu0 0
        %1111 = vmatpush1.bf16.msra.mxu0 %v1089
        %1112 = vmatprep.subr.bf16.mxu0 0
        %1113 = vmatpush1.bf16.msra.mxu0 %v1090
        %1114 = vmatprep.subr.bf16.mxu0 0
        %1115 = vmatpush1.bf16.msra.mxu0 %v1091
        %1116 = vmatprep.subr.bf16.mxu0 0
        %1117 = vmatpush1.bf16.msra.mxu0 0
        %1118 = vmatprep.subr.bf16.mxu0 0
        %1119 = vmatpush1.bf16.msra.mxu0 0
        %1120 = vmatprep.subr.bf16.mxu0 0
        %1121 = vmatpush1.bf16.msra.mxu0 0
        %1122 = vmatprep.subr.bf16.mxu0 0
        %1123 = vmatpush1.bf16.msra.mxu0 0
        %1124 = vmatprep.subr.bf16.mxu0 0
        %1125 = vmatpush1.bf16.msra.mxu0 0
        %1126 = vmatprep.subr.bf16.mxu0 0
        %1127 = vmatpush1.bf16.msra.mxu0 0
        %1128 = vmatprep.subr.bf16.mxu0 0
        %1129 = vmatpush1.bf16.msra.mxu0 0
        %1130 = vmatprep.subr.bf16.mxu0 0
        %1131 = vmatpush1.bf16.msra.mxu0 0
        %1132 = vmatprep.mubr.bf16.mxu0 0
        %1133 = vmatmul.mubr.bf16.gmra.mrb[0].mxu0 %v1028
        %v1134 = vpop.f32.mrb[0].mxu0
        %v1135 = vadd.f32 %v1050, %v1134
        %v1136 = vpop.f32.mrb[0].mxu0
        %v1137 = vpop.f32.mrb[0].mxu0
        %v1138 = vpop.f32.mrb[0].mxu0
        %1139 = vdwg.mxu0
        %v1140 = vmax.f32 %v1135, 0.0
        %v1141 = vpack.c.bf16 %v1140, %v1140
        %v1142 = vld [vmem:[#allocation12] sm:$0xf]
        %v1143 = vld [vmem:[#allocation12 + $0x4] sm:$0xf]
        %v1144 = vld [vmem:[#allocation12 + $0x8] sm:$0xf]
        %v1145 = vld [vmem:[#allocation12 + $0xc] sm:$0xf]
        %v1146 = vld [vmem:[#allocation12 + $0x10] sm:$0xf]
        %v1147 = vld [vmem:[#allocation12 + $0x14] sm:$0xf]
        %v1148 = vld [vmem:[#allocation12 + $0x18] sm:$0xf]
        %v1149 = vld [vmem:[#allocation12 + $0x1c] sm:$0xf]
        %v1150 = vld [vmem:[#allocation12 + $0x20] sm:$0xf]
        %v1151 = vld [vmem:[#allocation12 + $0x24] sm:$0xf]
        %v1152 = vld [vmem:[#allocation12 + $0x28] sm:$0xf]
        %v1153 = vld [vmem:[#allocation12 + $0x2c] sm:$0xf]
        %v1154 = vld [vmem:[#allocation12 + $0x30] sm:$0xf]
        %v1155 = vld [vmem:[#allocation12 + $0x34] sm:$0xf]
        %v1156 = vld [vmem:[#allocation12 + $0x38] sm:$0xf]
        %v1157 = vld [vmem:[#allocation12 + $0x3c] sm:$0xf]
        %v1158 = vld [vmem:[%s9] sm:$0x1]
        %v1160 = vlaneseq
        %v1161 = vshrl.u32 %v1160, 7
        %v1162 = vsub.s32 0, %v1161
        %v1163 = vrot.slane %v1158, %v1162
        %v1181 = vunpack.c.l.b16 %v1142
        %v1182 = vunpack.c.l.b16 %v1143
        %v1183 = vunpack.c.l.b16 %v1144
        %v1184 = vunpack.c.l.b16 %v1145
        %v1185 = vunpack.c.l.b16 %v1146
        %v1186 = vunpack.c.l.b16 %v1147
        %v1187 = vunpack.c.l.b16 %v1148
        %v1188 = vunpack.c.l.b16 %v1149
        %v1189 = vunpack.c.l.b16 %v1150
        %v1190 = vunpack.c.l.b16 %v1151
        %v1191 = vunpack.c.l.b16 %v1152
        %v1192 = vunpack.c.l.b16 %v1153
        %v1193 = vunpack.c.l.b16 %v1154
        %v1194 = vunpack.c.l.b16 %v1155
        %v1195 = vunpack.c.l.b16 %v1156
        %v1196 = vunpack.c.l.b16 %v1157
        %v1197 = vpack.c.b16 %v1182, %v1181
        %v1198 = vpack.c.b16 %v1184, %v1183
        %v1199 = vpack.c.b16 %v1186, %v1185
        %v1200 = vpack.c.b16 %v1188, %v1187
        %v1201 = vpack.c.b16 %v1190, %v1189
        %v1202 = vpack.c.b16 %v1192, %v1191
        %v1203 = vpack.c.b16 %v1194, %v1193
        %v1204 = vpack.c.b16 %v1196, %v1195
        %1213 = vmatprep.subr.bf16.mxu0 0
        %1214 = vmatpush1.bf16.msra.mxu0 %v1197
        %1215 = vmatprep.subr.bf16.mxu0 0
        %1216 = vmatpush1.bf16.msra.mxu0 %v1198
        %1217 = vmatprep.subr.bf16.mxu0 0
        %1218 = vmatpush1.bf16.msra.mxu0 %v1199
        %1219 = vmatprep.subr.bf16.mxu0 0
        %1220 = vmatpush1.bf16.msra.mxu0 %v1200
        %1221 = vmatprep.subr.bf16.mxu0 0
        %1222 = vmatpush1.bf16.msra.mxu0 %v1201
        %1223 = vmatprep.subr.bf16.mxu0 0
        %1224 = vmatpush1.bf16.msra.mxu0 %v1202
        %1225 = vmatprep.subr.bf16.mxu0 0
        %1226 = vmatpush1.bf16.msra.mxu0 %v1203
        %1227 = vmatprep.subr.bf16.mxu0 0
        %1228 = vmatpush1.bf16.msra.mxu0 %v1204
        %1229 = vmatprep.subr.bf16.mxu0 0
        %1230 = vmatpush1.bf16.msra.mxu0 0
        %1231 = vmatprep.subr.bf16.mxu0 0
        %1232 = vmatpush1.bf16.msra.mxu0 0
        %1233 = vmatprep.subr.bf16.mxu0 0
        %1234 = vmatpush1.bf16.msra.mxu0 0
        %1235 = vmatprep.subr.bf16.mxu0 0
        %1236 = vmatpush1.bf16.msra.mxu0 0
        %1237 = vmatprep.subr.bf16.mxu0 0
        %1238 = vmatpush1.bf16.msra.mxu0 0
        %1239 = vmatprep.subr.bf16.mxu0 0
        %1240 = vmatpush1.bf16.msra.mxu0 0
        %1241 = vmatprep.subr.bf16.mxu0 0
        %1242 = vmatpush1.bf16.msra.mxu0 0
        %1243 = vmatprep.subr.bf16.mxu0 0
        %1244 = vmatpush1.bf16.msra.mxu0 0
        %1245 = vmatprep.mubr.bf16.mxu0 0
        %1246 = vmatmul.mubr.bf16.gmra.mrb[0].mxu0 %v1141
        %v1247 = vpop.f32.mrb[0].mxu0
        %v1248 = vadd.f32 %v1163, %v1247
        %v1249 = vpop.f32.mrb[0].mxu0
        %v1250 = vpop.f32.mrb[0].mxu0
        %v1251 = vpop.f32.mrb[0].mxu0
        %1252 = vdwg.mxu0
        %v1253 = vadd.f32 %v1248, %v1023
        %v1254 = vld [vmem:[%s10] sm:$0x1]
        %s1255 = sld [smem:[#allocation2]]
        %v1256 = vstv %s1255
        %1257 = vmatprep.subr.mxu0 0.0
        %1258 = vmatpush1.xpose.msra.mxu0 %v1253
        %1259 = vmatprep.subr.mxu0 0.0
        %1260 = vmatpush1.xpose.msra.mxu0 0.0
        %1261 = vmatprep.subr.mxu0 0.0
        %1262 = vmatpush1.xpose.msra.mxu0 0.0
        %1263 = vmatprep.subr.mxu0 0.0
        %1264 = vmatpush1.xpose.msra.mxu0 0.0
        %1265 = vmatprep.subr.mxu0 0.0
        %1266 = vmatpush1.xpose.msra.mxu0 0.0
        %1267 = vmatprep.subr.mxu0 0.0
        %1268 = vmatpush1.xpose.msra.mxu0 0.0
        %1269 = vmatprep.subr.mxu0 0.0
        %1270 = vmatpush1.xpose.msra.mxu0 0.0
        %1271 = vmatprep.subr.mxu0 0.0
        %1272 = vmatpush1.xpose.msra.mxu0 0.0
        %1273 = vmatprep.subr.mxu0 0.0
        %1274 = vmatpush1.xpose.msra.mxu0 0.0
        %1275 = vmatprep.subr.mxu0 0.0
        %1276 = vmatpush1.xpose.msra.mxu0 0.0
        %1277 = vmatprep.subr.mxu0 0.0
        %1278 = vmatpush1.xpose.msra.mxu0 0.0
        %1279 = vmatprep.subr.mxu0 0.0
        %1280 = vmatpush1.xpose.msra.mxu0 0.0
        %1281 = vmatprep.subr.mxu0 0.0
        %1282 = vmatpush1.xpose.msra.mxu0 0.0
        %1283 = vmatprep.subr.mxu0 0.0
        %1284 = vmatpush1.xpose.msra.mxu0 0.0
        %1285 = vmatprep.subr.mxu0 0.0
        %1286 = vmatpush1.xpose.msra.mxu0 0.0
        %1287 = vmatprep.subr.mxu0 0.0
        %1288 = vmatpush1.xpose.msra.mxu0 0.0
        %1289 = vmatprep.subr.mxu0 0.0
        %1290 = vmatpush1.xpose.msra.mxu0 0.0
        %1291 = vmatprep.subr.mxu0 0.0
        %1292 = vmatpush1.xpose.msra.mxu0 0.0
        %1293 = vmatprep.subr.mxu0 0.0
        %1294 = vmatpush1.xpose.msra.mxu0 0.0
        %1295 = vmatprep.subr.mxu0 0.0
        %1296 = vmatpush1.xpose.msra.mxu0 0.0
        %1297 = vmatprep.subr.mxu0 0.0
        %1298 = vmatpush1.xpose.msra.mxu0 0.0
        %1299 = vmatprep.subr.mxu0 0.0
        %1300 = vmatpush1.xpose.msra.mxu0 0.0
        %1301 = vmatprep.subr.mxu0 0.0
        %1302 = vmatpush1.xpose.msra.mxu0 0.0
        %1303 = vmatprep.subr.mxu0 0.0
        %1304 = vmatpush1.xpose.msra.mxu0 0.0
        %1305 = vmatprep.subr.mxu0 0.0
        %1306 = vmatpush1.xpose.msra.mxu0 0.0
        %1307 = vmatprep.subr.mxu0 0.0
        %1308 = vmatpush1.xpose.msra.mxu0 0.0
        %1309 = vmatprep.subr.mxu0 0.0
        %1310 = vmatpush1.xpose.msra.mxu0 0.0
        %1311 = vmatprep.subr.mxu0 0.0
        %1312 = vmatpush1.xpose.msra.mxu0 0.0
        %1313 = vmatprep.subr.mxu0 0.0
        %1314 = vmatpush1.xpose.msra.mxu0 0.0
        %1315 = vmatprep.subr.mxu0 0.0
        %1316 = vmatpush1.xpose.msra.mxu0 0.0
        %1317 = vmatprep.subr.mxu0 0.0
        %1318 = vmatpush1.xpose.msra.mxu0 0.0
        %1319 = vmatprep.subr.mxu0 0.0
        %1320 = vmatpush1.xpose.msra.mxu0 0.0
        %1321 = vmatprep.mubr.f32.mxu0 0.0
        %1322 = vmatmul.mubr.f32.gmra.mrb[0].mxu0 %v1254
        %v1323 = vpop.f32.mrb[0].mxu0
        %v1324 = vadd.f32 %v1256, %v1323
        %v1325 = vpop.f32.mrb[0].mxu0
        %1326 = vdwg.mxu0
        %v1327 = vxor.u32 %v1324, 2147483648
        %v1328 = vmul.f32 %v1327, 1.442695
        %v1329 = vpow.pop %v1328
        %v1330 = vadd.f32 %v1329, 1.0
        %v1331 = vrcp.pop %v1330
        %v1332 = vmul.f32 1.0, %v1331
        %vm1333 = vcmask 57344
        %1334 = vst.msk [vmem:[%s492] sm:$0x1] %vm1333, %v1332
        %s1335 = sand.u32 %s296, 1
        %s1336 = scalar_lea.sflag [#allocation5], %s1335
        %s1337 = sand.u32 %s296, 1
        %s1338 = scalar_lea.vmem [#allocation14], %s1337
        // Predicated region
        $region93: #{tpu_custom_call.1} parent=67 // pred_check
          %p1339 = pneg %p306
        $region94: #{tpu_custom_call.1} parent=67 // pred_check_branch
          %1341 = sbr.rel (%p1339) target = $region96
        $region95: #{tpu_custom_call.1} parent=67 // pred_region
          %s1343 = ssub.s32 16, 16
          %1344 = vsyncadd %s1336, %s1343
          %s1345 = smul.addr %s31, 16
          %s1346 = scalar_lea.hbm %s12, %s1345
          %s1348 = sshll.u32 %s1338, 4
          %s1349 = int_to_ptr.vmem [resolvable:$true] %s1348
          %1351 = dma.vmem_to_hbm [thread:$0]  %s1349, 16, %s1346, %s1336
        $region96: #{tpu_custom_call.1} parent=67 // pred_fallthru
          _
      $region68: #{tpu_custom_call.1} parent=5 // pred_fallthru
        _
      %p1352 = scmp.le.s32.totalorder 2, %s26
      // Predicated region
      $region97: #{tpu_custom_call.1} parent=5 // pred_check
        %p1353 = pneg %p1352
      $region98: #{tpu_custom_call.1} parent=5 // pred_check_branch
        %1355 = sbr.rel (%p1353) target = $region100
      $region99: #{tpu_custom_call.1} parent=5 // pred_region
        %s1356 = ssub.s32 %s26, 2
        // Predicated region
        $region101: #{tpu_custom_call.1} parent=99 // pred_check
          %p1357 = pneg %p312
        $region102: #{tpu_custom_call.1} parent=99 // pred_check_branch
          %1359 = sbr.rel (%p1357) target = $region104
        $region103: #{tpu_custom_call.1} parent=99 // pred_region
          %s1360 = sand.u32 %s297, 1
          %s1361 = scalar_lea.sflag [#allocation5], %s1360
          %s1362 = sand.u32 %s297, 1
          %s1363 = scalar_lea.vmem [#allocation14], %s1362
          %1364 = dma.done %s1361, 16
        $region104: #{tpu_custom_call.1} parent=99 // pred_fallthru
          _
      $region100: #{tpu_custom_call.1} parent=5 // pred_fallthru
        _
    $region6: #{tpu_custom_call.1} parent=1 // loop_footer
      %s30 = sadd.s32 1, %s26
    $region7: #{tpu_custom_call.1} parent=1 // loop_footer_branch
      %25 = sbr.rel target = $region3
    $region8: #{tpu_custom_call.1} parent=1 // loop_exit
      _
    %1365 = vsyncpa [#allocation4], 1
    %s1366 = scalar_lea.sflag [#allocation4], 1
    %1367 = vsyncpa %s1366, 1
    %1368 = vsyncpa [#allocation7], 1
    %1369 = vsyncpa [#allocation10], 1
    %1370 = vsyncpa [#allocation13], 1
    %1371 = vsyncpa [#allocation5], 1
    %s1372 = scalar_lea.sflag [#allocation5], 1
    %1373 = vsyncpa %s1372, 1

</llo_original>
